<compile_context>
chip_gen: v6e
topology: v6e:2x2x1
jax: 0.10.0
libtpu: 0.0.40
codegen_flags: <defaults>
</compile_context>

<pallas_src>
import numpy as np
import jax
import jax.numpy as jnp
from jax import lax
from jax.experimental import pallas as pl
from jax.experimental.pallas import tpu as pltpu


# ----------------------------------------------------------------------------
# Fused kernel factory: one grid step handles bb batch elements laid out as a
# (C, bb*Np) block (features on sublanes, points*batch on the 128-lane axis).
# ----------------------------------------------------------------------------
def _make_kernel(bb, n_pad, C, M):
    CC = C * C
    L = bb * n_pad

    def kernel(x_ref,
               st_w1_ref, st_b1_ref, st_w2_ref, st_b2_ref,
               st_h1_ref, st_c1_ref, st_h2_ref, st_c2_ref, st_h3_ref, st_c3_ref,
               fe_w1_ref, fe_b1_ref, fe_w2_ref, fe_b2_ref,
               hd_w1_ref, hd_b1_ref, hd_w2_ref, hd_b2_ref,
               out_ref,
               pool1_ref, pool2_ref):
        relu = lambda v: jnp.maximum(v, 0.0)

        def mmb(a, b):  # big L-wide matmuls: bf16 MXU inputs, f32 accumulation
            return jnp.dot(a.astype(jnp.bfloat16), b.astype(jnp.bfloat16),
                           preferred_element_type=jnp.float32)

        def mmf(a, b):  # tiny head matmuls: keep f32
            return jnp.dot(a, b, preferred_element_type=jnp.float32)

        x = x_ref[...]                                        # (C, L) bf16

        # ---- SpatialTransformer feature extractor (lane-batched) ------------
        a = relu(mmb(st_w1_ref[...], x) + st_b1_ref[...])     # (M, L)
        a = relu(mmb(st_w2_ref[...], a) + st_b2_ref[...])     # (M, L)

        # Per-batch max over its static Np-wide (128-aligned) lane slice.
        for b in range(bb):
            pool1_ref[:, b:b + 1] = jnp.max(
                a[:, b * n_pad:(b + 1) * n_pad], axis=1, keepdims=True)

        # ---- SpatialTransformer head, batched over the bb block -------------
        p1 = pool1_ref[...]                                   # (M, bb)
        t = relu(mmf(st_h1_ref[...], p1) + st_c1_ref[...])
        t = relu(mmf(st_h2_ref[...], t) + st_c2_ref[...])
        t = mmf(st_h3_ref[...], t) + st_c3_ref[...]           # (CC, bb)

        # ---- Expand to per-lane coefficients: Texp[k, l] = t[k, batch(l)] ---
        if bb == 1:
            t_exp = jnp.broadcast_to(t, (CC, L))              # lane broadcast
        else:
            lane = lax.broadcasted_iota(jnp.int32, (bb, L), 1)
            row = lax.broadcasted_iota(jnp.int32, (bb, L), 0)
            start = row * n_pad
            seg = jnp.logical_and(lane >= start,
                                  lane < start + n_pad).astype(jnp.float32)
            t_exp = mmf(t, seg)                               # exact 0/1 select

        # ---- Trunk transform on the VPU: x2 = (T_raw^T + I) @ x -------------
        #   x2[d, :] = x[d, :] + sum_c Texp[c*C + d, :] * x[c, :]
        xf = x.astype(jnp.float32)
        x2 = xf
        for c in range(C):
            x2 = x2 + t_exp[c * C:(c + 1) * C, :] * xf[c:c + 1, :]

        # ---- Trunk feature extractor (lane-batched) --------------------------
        g = relu(mmb(fe_w1_ref[...], x2) + fe_b1_ref[...])    # (M, L)
        g = relu(mmb(fe_w2_ref[...], g) + fe_b2_ref[...])     # (M, L)
        for b in range(bb):
            pool2_ref[:, b:b + 1] = jnp.max(
                g[:, b * n_pad:(b + 1) * n_pad], axis=1, keepdims=True)

        # ---- PointNet head; one lane-dense (1, bb) store ---------------------
        y = relu(mmf(hd_w1_ref[...], pool2_ref[...]) + hd_b1_ref[...])
        y = mmf(hd_w2_ref[...], y) + hd_b2_ref[...]           # (1, bb)
        out_ref[0] = y

    return kernel


# ----------------------------------------------------------------------------
# Wrapper
# ----------------------------------------------------------------------------
def _device_plan():
    """(vmem_limit_bytes, vmem_budget_for_bb, want_even_grid) per generation."""
    try:
        kind = jax.devices()[0].device_kind.lower()
    except Exception:
        kind = ""
    if "v7" in kind:                       # 64 MiB VMEM, 2 TensorCores
        return 48 << 20, 36 << 20, True
    if "v4" in kind or "v5" in kind or "v6" in kind:   # 128 MiB VMEM, 1 TC
        return 96 << 20, 72 << 20, False
    return None, 12 << 20, False           # unknown: platform default limit


def _pick_block_b(B, per_b_bytes, budget_bytes, want_even_grid, cap=128):
    cap = max(1, min(B, cap, int(budget_bytes // max(per_b_bytes, 1))))
    divisors = [d for d in range(cap, 0, -1) if B % d == 0]
    if not divisors:
        return 1
    if want_even_grid:
        for d in divisors:
            if (B // d) % 2 == 0:          # keep both v7x TensorCores busy
                return d
    return divisors[0]


def pointnet_forward(x_bcn, p, block_b=None):
    """x_bcn: (B, C_in, N) exactly like the PyTorch module input (NCW)."""
    B, C, N = x_bcn.shape
    M = p["st_w1"].shape[0]
    CC = C * C
    x_bcn = x_bcn.astype(jnp.float32)

    # Pad the point axis to a multiple of 128 by replicating the last point;
    # duplicated columns cannot change either max-pool, so this is exact.
    n_pad = max(128, ((N + 127) // 128) * 128)
    if n_pad != N:
        pad = jnp.broadcast_to(x_bcn[:, :, -1:], (B, C, n_pad - N))
        x_bcn = jnp.concatenate([x_bcn, pad], axis=2)

    vmem_limit, vmem_budget, even_grid = _device_plan()
    # Rough resident bytes per batch element per grid step:
    #   x block bf16 double-buffered + ~3 live (M, Np) f32 activations
    #   + (CC, Np) f32 coefficient block + (C, Np) f32 transformed x.
    per_b = (2 * 2 * C + 12 * M + 4 * CC + 4 * C) * n_pad
    bb = block_b if block_b is not None else _pick_block_b(
        B, per_b, vmem_budget, even_grid)
    assert B % bb == 0, (B, bb)
    L = bb * n_pad

    # NCW -> (C, B*Np): batch blocks concatenated along the 128-lane axis.
    x_cl = jnp.transpose(x_bcn, (1, 0, 2)).reshape(C, B * n_pad).astype(jnp.bfloat16)

    def wspec(shape):
        zeros = (0,) * len(shape)
        return pl.BlockSpec(shape, lambda i: zeros)

    out = pl.pallas_call(
        _make_kernel(bb, n_pad, C, M),
        out_shape=jax.ShapeDtypeStruct((B // bb, 1, bb), jnp.float32),
        grid=(B // bb,),
        in_specs=[
            pl.BlockSpec((C, L), lambda i: (0, i)),   # x, bf16, lane-batched
            wspec((M, C)), wspec((M, 1)),      # transformer conv1 (BN folded)
            wspec((M, M)), wspec((M, 1)),      # transformer conv2 (BN folded)
            wspec((M, M)), wspec((M, 1)),      # transformer head lin1 (BN folded)
            wspec((M, M)), wspec((M, 1)),      # transformer head lin2 (BN folded)
            wspec((CC, M)), wspec((CC, 1)),    # transformer head lin3
            wspec((M, C)), wspec((M, 1)),      # trunk conv1 (BN folded)
            wspec((M, M)), wspec((M, 1)),      # trunk conv2 (BN folded)
            wspec((M, M)), wspec((M, 1)),      # trunk head lin1 (BN folded)
            wspec((1, M)), wspec((1, 1)),      # trunk head lin2
        ],
        out_specs=pl.BlockSpec((1, 1, bb), lambda i: (i, 0, 0)),
        scratch_shapes=[
            pltpu.VMEM((M, bb), jnp.float32),  # pooled features, stage 1
            pltpu.VMEM((M, bb), jnp.float32),  # pooled features, trunk
        ],
        compiler_params=pltpu.CompilerParams(
            dimension_semantics=("parallel",),
            vmem_limit_bytes=vmem_limit,
        ),
    )(x_cl,
      p["st_w1"], p["st_b1"], p["st_w2"], p["st_b2"],
      p["st_h1"], p["st_c1"], p["st_h2"], p["st_c2"], p["st_h3"], p["st_c3"],
      p["fe_w1"], p["fe_b1"], p["fe_w2"], p["fe_b2"],
      p["hd_w1"], p["hd_b1"], p["hd_w2"], p["hd_b2"])
    return out.reshape(B, 1)


# ----------------------------------------------------------------------------
# Deterministic parameter init (+ eval-mode BatchNorm folding).
# Weights in PyTorch (out, in) layout; biases as (out, 1) columns.
# ----------------------------------------------------------------------------
def init_params(key, in_channels, middle=64, out_channels=1):
    keys = jax.random.split(key, 36)
    it = iter(keys)

    def nrm(shape, std=0.1):
        return std * jax.random.normal(next(it), shape, dtype=jnp.float32)

    def layer_bn(kin, kout, eps=1e-5):
        w = nrm((kout, kin))
        b = nrm((kout,))
        gamma = 1.0 + 0.1 * jax.random.normal(next(it), (kout,), dtype=jnp.float32)
        beta = nrm((kout,), 0.05)
        scale = gamma / jnp.sqrt(1.0 + eps)          # eval-mode BN: mean=0, var=1
        return w * scale[:, None], (b * scale + beta).reshape(kout, 1)

    def layer_plain(kin, kout):
        return nrm((kout, kin)), nrm((kout,)).reshape(kout, 1)

    C, M = in_channels, middle
    p = {}
    # SpatialTransformer: conv1, conv2 (BN), head: lin(BN), lin(BN), lin(plain)
    p["st_w1"], p["st_b1"] = layer_bn(C, M)
    p["st_w2"], p["st_b2"] = layer_bn(M, M)
    p["st_h1"], p["st_c1"] = layer_bn(M, M)
    p["st_h2"], p["st_c2"] = layer_bn(M, M)
    p["st_h3"], p["st_c3"] = layer_plain(M, C * C)
    # PointNet trunk feature extractor (conv+BN x2) and head (lin+BN, lin)
    p["fe_w1"], p["fe_b1"] = layer_bn(C, M)
    p["fe_w2"], p["fe_b2"] = layer_bn(M, M)
    p["hd_w1"], p["hd_b1"] = layer_bn(M, M)
    p["hd_w2"], p["hd_b2"] = layer_plain(M, out_channels)   # (1, M), (1, 1)
    return p


# ----------------------------------------------------------------------------
# Pure-JAX reference (same folded params), f32 HIGHEST precision.
# ----------------------------------------------------------------------------
def reference_forward(x_bcn, p):
    hp = jax.lax.Precision.HIGHEST
    relu = lambda v: jnp.maximum(v, 0.0)
    B, C, N = x_bcn.shape
    x = x_bcn.astype(jnp.float32)

    def conv(w, b, v):     # v: (B, Cin, N), w: (Cout, Cin), b: (Cout, 1)
        return jnp.einsum("oc,bcn->bon", w, v, precision=hp) + b[None]

    def lin(w, b, v):      # v: (B, Cin), w: (Cout, Cin), b: (Cout, 1)
        return jnp.einsum("oc,bc->bo", w, v, precision=hp) + b[:, 0][None]

    h = relu(conv(p["st_w1"], p["st_b1"], x))
    h = relu(conv(p["st_w2"], p["st_b2"], h))
    g = jnp.max(h, axis=2)                                   # (B, M)
    t = relu(lin(p["st_h1"], p["st_c1"], g))
    t = relu(lin(p["st_h2"], p["st_c2"], t))
    t = lin(p["st_h3"], p["st_c3"], t)                       # (B, C*C)
    T = t.reshape(B, C, C) + jnp.eye(C, dtype=jnp.float32)[None]

    # bmm(x^T, T) then transpose back == T^T @ x per batch (NCW orientation)
    x2 = jnp.einsum("bcd,bcn->bdn", T, x, precision=hp)
    h = relu(conv(p["fe_w1"], p["fe_b1"], x2))
    h = relu(conv(p["fe_w2"], p["fe_b2"], h))
    g = jnp.max(h, axis=2)
    y = relu(lin(p["hd_w1"], p["hd_b1"], g))
    y = lin(p["hd_w2"], p["hd_b2"], y)                       # (B, 1)
    return y


if __name__ == "__main__":
    key = jax.random.PRNGKey(0)
    kx, kp, kx2 = jax.random.split(key, 3)

    B, C_in, N = 2, 4, 16                     # (batch, in_channels, num_points)
    params = init_params(kp, C_in)

    # Tolerance note: the kernel feeds the MXU bf16 inputs (f32 accumulation)
    # while the reference is f32 Precision.HIGHEST, so 2e-2 documents the
    # expected bf16-level deviation (measured errors are ~1e-3 at these sizes).
    TOL = dict(rtol=2e-2, atol=2e-2)

    x = jax.random.normal(kx, (B, C_in, N), dtype=jnp.float32)
    out = jax.block_until_ready(pointnet_forward(x, params))
    assert out.shape == (B, 1), out.shape
    np.testing.assert_allclose(np.asarray(out),
                               np.asarray(reference_forward(x, params)), **TOL)

    # Also exercise a larger batch (bb > 1 / multi-step grid path).
    B2 = 8
    x_big = jax.random.normal(kx2, (B2, C_in, N), dtype=jnp.float32)
    out2 = jax.block_until_ready(pointnet_forward(x_big, params))
    assert out2.shape == (B2, 1), out2.shape
    np.testing.assert_allclose(np.asarray(out2),
                               np.asarray(reference_forward(x_big, params)), **TOL)

    print("KERNEL_OK")
</pallas_src>

<mosaic_0001>
module attributes {stable_mosaic.version = 11 : i64} {
  func.func @kernel(%arg0: i32, %arg1: memref<4x256xbf16, #tpu.memory_space<vmem>>, %arg2: memref<64x4xf32, #tpu.memory_space<vmem>>, %arg3: memref<64x1xf32, #tpu.memory_space<vmem>>, %arg4: memref<64x64xf32, #tpu.memory_space<vmem>>, %arg5: memref<64x1xf32, #tpu.memory_space<vmem>>, %arg6: memref<64x64xf32, #tpu.memory_space<vmem>>, %arg7: memref<64x1xf32, #tpu.memory_space<vmem>>, %arg8: memref<64x64xf32, #tpu.memory_space<vmem>>, %arg9: memref<64x1xf32, #tpu.memory_space<vmem>>, %arg10: memref<16x64xf32, #tpu.memory_space<vmem>>, %arg11: memref<16x1xf32, #tpu.memory_space<vmem>>, %arg12: memref<64x4xf32, #tpu.memory_space<vmem>>, %arg13: memref<64x1xf32, #tpu.memory_space<vmem>>, %arg14: memref<64x64xf32, #tpu.memory_space<vmem>>, %arg15: memref<64x1xf32, #tpu.memory_space<vmem>>, %arg16: memref<64x64xf32, #tpu.memory_space<vmem>>, %arg17: memref<64x1xf32, #tpu.memory_space<vmem>>, %arg18: memref<1x64xf32, #tpu.memory_space<vmem>>, %arg19: memref<1x1xf32, #tpu.memory_space<vmem>>, %arg20: memref<1x1x2xf32, #tpu.memory_space<vmem>>, %arg21: memref<64x2xf32, #tpu.memory_space<vmem>>, %arg22: memref<64x2xf32, #tpu.memory_space<vmem>>) attributes {dimension_semantics = [#tpu.dimension_semantics<parallel>], iteration_bounds = array<i64: 1>, scalar_prefetch = 0 : i64, scratch_operands = 2 : i64, tpu.core_type = #tpu.core_type<tc>, window_params = [{transform_indices = @transform_0, window_bounds = array<i64: 4, 256>}, {pipeline_mode = #tpu.pipeline_mode<synchronous>, transform_indices = @transform_1, window_bounds = array<i64: 64, 4>}, {pipeline_mode = #tpu.pipeline_mode<synchronous>, transform_indices = @transform_2, window_bounds = array<i64: 64, 1>}, {pipeline_mode = #tpu.pipeline_mode<synchronous>, transform_indices = @transform_3, window_bounds = array<i64: 64, 64>}, {pipeline_mode = #tpu.pipeline_mode<synchronous>, transform_indices = @transform_4, window_bounds = array<i64: 64, 1>}, {pipeline_mode = #tpu.pipeline_mode<synchronous>, transform_indices = @transform_5, window_bounds = array<i64: 64, 64>}, {pipeline_mode = #tpu.pipeline_mode<synchronous>, transform_indices = @transform_6, window_bounds = array<i64: 64, 1>}, {pipeline_mode = #tpu.pipeline_mode<synchronous>, transform_indices = @transform_7, window_bounds = array<i64: 64, 64>}, {pipeline_mode = #tpu.pipeline_mode<synchronous>, transform_indices = @transform_8, window_bounds = array<i64: 64, 1>}, {pipeline_mode = #tpu.pipeline_mode<synchronous>, transform_indices = @transform_9, window_bounds = array<i64: 16, 64>}, {pipeline_mode = #tpu.pipeline_mode<synchronous>, transform_indices = @transform_10, window_bounds = array<i64: 16, 1>}, {pipeline_mode = #tpu.pipeline_mode<synchronous>, transform_indices = @transform_11, window_bounds = array<i64: 64, 4>}, {pipeline_mode = #tpu.pipeline_mode<synchronous>, transform_indices = @transform_12, window_bounds = array<i64: 64, 1>}, {pipeline_mode = #tpu.pipeline_mode<synchronous>, transform_indices = @transform_13, window_bounds = array<i64: 64, 64>}, {pipeline_mode = #tpu.pipeline_mode<synchronous>, transform_indices = @transform_14, window_bounds = array<i64: 64, 1>}, {pipeline_mode = #tpu.pipeline_mode<synchronous>, transform_indices = @transform_15, window_bounds = array<i64: 64, 64>}, {pipeline_mode = #tpu.pipeline_mode<synchronous>, transform_indices = @transform_16, window_bounds = array<i64: 64, 1>}, {pipeline_mode = #tpu.pipeline_mode<synchronous>, transform_indices = @transform_17, window_bounds = array<i64: 1, 64>}, {pipeline_mode = #tpu.pipeline_mode<synchronous>, transform_indices = @transform_18, window_bounds = array<i64: 1, 1>}, {transform_indices = @transform_19, window_bounds = array<i64: 1, 1, 2>}]} {
    %c0 = arith.constant 0 : index
    %c0_0 = arith.constant 0 : index
    %0 = vector.load %arg1[%c0, %c0_0] : memref<4x256xbf16, #tpu.memory_space<vmem>>, vector<4x256xbf16>
    %c0_1 = arith.constant 0 : index
    %c0_2 = arith.constant 0 : index
    %1 = vector.load %arg2[%c0_1, %c0_2] : memref<64x4xf32, #tpu.memory_space<vmem>>, vector<64x4xf32>
    %2 = arith.truncf %1 : vector<64x4xf32> to vector<64x4xbf16>
    %cst = arith.constant dense<0.000000e+00> : vector<64x256xf32>
    %3 = tpu.matmul %2, %0, %cst {dimension_numbers = #tpu.dot_dimension_numbers<[1], [0], [0], [1], [0, 0, 1, 1], [], []>} : vector<64x4xbf16>, vector<4x256xbf16>, vector<64x256xf32> -> vector<64x256xf32>
    %c0_3 = arith.constant 0 : index
    %c0_4 = arith.constant 0 : index
    %4 = vector.load %arg3[%c0_3, %c0_4] : memref<64x1xf32, #tpu.memory_space<vmem>>, vector<64x1xf32>
    %5 = vector.broadcast %4 : vector<64x1xf32> to vector<64x256xf32>
    %6 = arith.addf %3, %5 : vector<64x256xf32>
    %cst_5 = arith.constant 0.000000e+00 : f32
    %7 = vector.broadcast %cst_5 : f32 to vector<64x256xf32>
    %8 = arith.maximumf %6, %7 : vector<64x256xf32>
    %c0_6 = arith.constant 0 : index
    %c0_7 = arith.constant 0 : index
    %9 = vector.load %arg4[%c0_6, %c0_7] : memref<64x64xf32, #tpu.memory_space<vmem>>, vector<64x64xf32>
    %10 = arith.truncf %9 : vector<64x64xf32> to vector<64x64xbf16>
    %11 = arith.truncf %8 : vector<64x256xf32> to vector<64x256xbf16>
    %cst_8 = arith.constant dense<0.000000e+00> : vector<64x256xf32>
    %12 = tpu.matmul %10, %11, %cst_8 {dimension_numbers = #tpu.dot_dimension_numbers<[1], [0], [0], [1], [0, 0, 1, 1], [], []>} : vector<64x64xbf16>, vector<64x256xbf16>, vector<64x256xf32> -> vector<64x256xf32>
    %c0_9 = arith.constant 0 : index
    %c0_10 = arith.constant 0 : index
    %13 = vector.load %arg5[%c0_9, %c0_10] : memref<64x1xf32, #tpu.memory_space<vmem>>, vector<64x1xf32>
    %14 = vector.broadcast %13 : vector<64x1xf32> to vector<64x256xf32>
    %15 = arith.addf %12, %14 : vector<64x256xf32>
    %cst_11 = arith.constant 0.000000e+00 : f32
    %16 = vector.broadcast %cst_11 : f32 to vector<64x256xf32>
    %17 = arith.maximumf %15, %16 : vector<64x256xf32>
    %18 = vector.extract_strided_slice %17 {offsets = [0, 0], sizes = [64, 128], strides = [1, 1]} : vector<64x256xf32> to vector<64x128xf32>
    %cst_12 = arith.constant dense<0xFF800000> : vector<64xf32>
    %19 = vector.multi_reduction <maximumf>, %18, %cst_12 [1] : vector<64x128xf32> to vector<64xf32>
    %20 = vector.shape_cast %19 : vector<64xf32> to vector<64x1xf32>
    %c0_13 = arith.constant 0 : index
    %c0_14 = arith.constant 0 : index
    %21 = vector.load %arg21[%c0_13, %c0_14] : memref<64x2xf32, #tpu.memory_space<vmem>>, vector<64x1xf32>
    tpu.vector_store %arg21[%c0_13, %c0_14], %20 {strides = array<i32>} : memref<64x2xf32, #tpu.memory_space<vmem>>, vector<64x1xf32>,
    %22 = vector.extract_strided_slice %17 {offsets = [0, 128], sizes = [64, 128], strides = [1, 1]} : vector<64x256xf32> to vector<64x128xf32>
    %cst_15 = arith.constant dense<0xFF800000> : vector<64xf32>
    %23 = vector.multi_reduction <maximumf>, %22, %cst_15 [1] : vector<64x128xf32> to vector<64xf32>
    %24 = vector.shape_cast %23 : vector<64xf32> to vector<64x1xf32>
    %c0_16 = arith.constant 0 : index
    %c1 = arith.constant 1 : index
    %25 = vector.load %arg21[%c0_16, %c1] : memref<64x2xf32, #tpu.memory_space<vmem>>, vector<64x1xf32>
    tpu.vector_store %arg21[%c0_16, %c1], %24 {strides = array<i32>} : memref<64x2xf32, #tpu.memory_space<vmem>>, vector<64x1xf32>,
    %c0_17 = arith.constant 0 : index
    %c0_18 = arith.constant 0 : index
    %26 = vector.load %arg21[%c0_17, %c0_18] : memref<64x2xf32, #tpu.memory_space<vmem>>, vector<64x2xf32>
    %c0_19 = arith.constant 0 : index
    %c0_20 = arith.constant 0 : index
    %27 = vector.load %arg6[%c0_19, %c0_20] : memref<64x64xf32, #tpu.memory_space<vmem>>, vector<64x64xf32>
    %cst_21 = arith.constant dense<0.000000e+00> : vector<64x2xf32>
    %28 = tpu.matmul %27, %26, %cst_21 {dimension_numbers = #tpu.dot_dimension_numbers<[1], [0], [0], [1], [0, 0, 1, 1], [], []>} : vector<64x64xf32>, vector<64x2xf32>, vector<64x2xf32> -> vector<64x2xf32>
    %c0_22 = arith.constant 0 : index
    %c0_23 = arith.constant 0 : index
    %29 = vector.load %arg7[%c0_22, %c0_23] : memref<64x1xf32, #tpu.memory_space<vmem>>, vector<64x1xf32>
    %30 = vector.broadcast %29 : vector<64x1xf32> to vector<64x2xf32>
    %31 = arith.addf %28, %30 : vector<64x2xf32>
    %cst_24 = arith.constant 0.000000e+00 : f32
    %32 = vector.broadcast %cst_24 : f32 to vector<64x2xf32>
    %33 = arith.maximumf %31, %32 : vector<64x2xf32>
    %c0_25 = arith.constant 0 : index
    %c0_26 = arith.constant 0 : index
    %34 = vector.load %arg8[%c0_25, %c0_26] : memref<64x64xf32, #tpu.memory_space<vmem>>, vector<64x64xf32>
    %cst_27 = arith.constant dense<0.000000e+00> : vector<64x2xf32>
    %35 = tpu.matmul %34, %33, %cst_27 {dimension_numbers = #tpu.dot_dimension_numbers<[1], [0], [0], [1], [0, 0, 1, 1], [], []>} : vector<64x64xf32>, vector<64x2xf32>, vector<64x2xf32> -> vector<64x2xf32>
    %c0_28 = arith.constant 0 : index
    %c0_29 = arith.constant 0 : index
    %36 = vector.load %arg9[%c0_28, %c0_29] : memref<64x1xf32, #tpu.memory_space<vmem>>, vector<64x1xf32>
    %37 = vector.broadcast %36 : vector<64x1xf32> to vector<64x2xf32>
    %38 = arith.addf %35, %37 : vector<64x2xf32>
    %cst_30 = arith.constant 0.000000e+00 : f32
    %39 = vector.broadcast %cst_30 : f32 to vector<64x2xf32>
    %40 = arith.maximumf %38, %39 : vector<64x2xf32>
    %c0_31 = arith.constant 0 : index
    %c0_32 = arith.constant 0 : index
    %41 = vector.load %arg10[%c0_31, %c0_32] : memref<16x64xf32, #tpu.memory_space<vmem>>, vector<16x64xf32>
    %cst_33 = arith.constant dense<0.000000e+00> : vector<16x2xf32>
    %42 = tpu.matmul %41, %40, %cst_33 {dimension_numbers = #tpu.dot_dimension_numbers<[1], [0], [0], [1], [0, 0, 1, 1], [], []>} : vector<16x64xf32>, vector<64x2xf32>, vector<16x2xf32> -> vector<16x2xf32>
    %c0_34 = arith.constant 0 : index
    %c0_35 = arith.constant 0 : index
    %43 = vector.load %arg11[%c0_34, %c0_35] : memref<16x1xf32, #tpu.memory_space<vmem>>, vector<16x1xf32>
    %44 = vector.broadcast %43 : vector<16x1xf32> to vector<16x2xf32>
    %45 = arith.addf %42, %44 : vector<16x2xf32>
    %46 = tpu.iota {dimensions = array<i32: 1>} : vector<2x256xi32>
    %47 = tpu.iota {dimensions = array<i32: 0>} : vector<2x256xi32>
    %c128_i32 = arith.constant 128 : i32
    %48 = vector.broadcast %c128_i32 : i32 to vector<2x256xi32>
    %49 = arith.muli %47, %48 : vector<2x256xi32>
    %50 = arith.cmpi sge, %46, %49 : vector<2x256xi32>
    %c128_i32_36 = arith.constant 128 : i32
    %51 = vector.broadcast %c128_i32_36 : i32 to vector<2x256xi32>
    %52 = arith.addi %49, %51 : vector<2x256xi32>
    %53 = arith.cmpi slt, %46, %52 : vector<2x256xi32>
    %54 = arith.andi %50, %53 : vector<2x256xi1>
    %55 = arith.extui %54 : vector<2x256xi1> to vector<2x256xi32>
    %56 = arith.sitofp %55 : vector<2x256xi32> to vector<2x256xf32>
    %cst_37 = arith.constant dense<0.000000e+00> : vector<16x256xf32>
    %57 = tpu.matmul %45, %56, %cst_37 {dimension_numbers = #tpu.dot_dimension_numbers<[1], [0], [0], [1], [0, 0, 1, 1], [], []>} : vector<16x2xf32>, vector<2x256xf32>, vector<16x256xf32> -> vector<16x256xf32>
    %58 = arith.extf %0 : vector<4x256xbf16> to vector<4x256xf32>
    %59 = vector.extract_strided_slice %57 {offsets = [0, 0], sizes = [4, 256], strides = [1, 1]} : vector<16x256xf32> to vector<4x256xf32>
    %60 = vector.extract_strided_slice %58 {offsets = [0, 0], sizes = [1, 256], strides = [1, 1]} : vector<4x256xf32> to vector<1x256xf32>
    %61 = vector.broadcast %60 : vector<1x256xf32> to vector<4x256xf32>
    %62 = arith.mulf %59, %61 : vector<4x256xf32>
    %63 = arith.addf %58, %62 : vector<4x256xf32>
    %64 = vector.extract_strided_slice %57 {offsets = [4, 0], sizes = [4, 256], strides = [1, 1]} : vector<16x256xf32> to vector<4x256xf32>
    %65 = vector.extract_strided_slice %58 {offsets = [1, 0], sizes = [1, 256], strides = [1, 1]} : vector<4x256xf32> to vector<1x256xf32>
    %66 = vector.broadcast %65 : vector<1x256xf32> to vector<4x256xf32>
    %67 = arith.mulf %64, %66 : vector<4x256xf32>
    %68 = arith.addf %63, %67 : vector<4x256xf32>
    %69 = vector.extract_strided_slice %57 {offsets = [8, 0], sizes = [4, 256], strides = [1, 1]} : vector<16x256xf32> to vector<4x256xf32>
    %70 = vector.extract_strided_slice %58 {offsets = [2, 0], sizes = [1, 256], strides = [1, 1]} : vector<4x256xf32> to vector<1x256xf32>
    %71 = vector.broadcast %70 : vector<1x256xf32> to vector<4x256xf32>
    %72 = arith.mulf %69, %71 : vector<4x256xf32>
    %73 = arith.addf %68, %72 : vector<4x256xf32>
    %74 = vector.extract_strided_slice %57 {offsets = [12, 0], sizes = [4, 256], strides = [1, 1]} : vector<16x256xf32> to vector<4x256xf32>
    %75 = vector.extract_strided_slice %58 {offsets = [3, 0], sizes = [1, 256], strides = [1, 1]} : vector<4x256xf32> to vector<1x256xf32>
    %76 = vector.broadcast %75 : vector<1x256xf32> to vector<4x256xf32>
    %77 = arith.mulf %74, %76 : vector<4x256xf32>
    %78 = arith.addf %73, %77 : vector<4x256xf32>
    %c0_38 = arith.constant 0 : index
    %c0_39 = arith.constant 0 : index
    %79 = vector.load %arg12[%c0_38, %c0_39] : memref<64x4xf32, #tpu.memory_space<vmem>>, vector<64x4xf32>
    %80 = arith.truncf %79 : vector<64x4xf32> to vector<64x4xbf16>
    %81 = arith.truncf %78 : vector<4x256xf32> to vector<4x256xbf16>
    %cst_40 = arith.constant dense<0.000000e+00> : vector<64x256xf32>
    %82 = tpu.matmul %80, %81, %cst_40 {dimension_numbers = #tpu.dot_dimension_numbers<[1], [0], [0], [1], [0, 0, 1, 1], [], []>} : vector<64x4xbf16>, vector<4x256xbf16>, vector<64x256xf32> -> vector<64x256xf32>
    %c0_41 = arith.constant 0 : index
    %c0_42 = arith.constant 0 : index
    %83 = vector.load %arg13[%c0_41, %c0_42] : memref<64x1xf32, #tpu.memory_space<vmem>>, vector<64x1xf32>
    %84 = vector.broadcast %83 : vector<64x1xf32> to vector<64x256xf32>
    %85 = arith.addf %82, %84 : vector<64x256xf32>
    %cst_43 = arith.constant 0.000000e+00 : f32
    %86 = vector.broadcast %cst_43 : f32 to vector<64x256xf32>
    %87 = arith.maximumf %85, %86 : vector<64x256xf32>
    %c0_44 = arith.constant 0 : index
    %c0_45 = arith.constant 0 : index
    %88 = vector.load %arg14[%c0_44, %c0_45] : memref<64x64xf32, #tpu.memory_space<vmem>>, vector<64x64xf32>
    %89 = arith.truncf %88 : vector<64x64xf32> to vector<64x64xbf16>
    %90 = arith.truncf %87 : vector<64x256xf32> to vector<64x256xbf16>
    %cst_46 = arith.constant dense<0.000000e+00> : vector<64x256xf32>
    %91 = tpu.matmul %89, %90, %cst_46 {dimension_numbers = #tpu.dot_dimension_numbers<[1], [0], [0], [1], [0, 0, 1, 1], [], []>} : vector<64x64xbf16>, vector<64x256xbf16>, vector<64x256xf32> -> vector<64x256xf32>
    %c0_47 = arith.constant 0 : index
    %c0_48 = arith.constant 0 : index
    %92 = vector.load %arg15[%c0_47, %c0_48] : memref<64x1xf32, #tpu.memory_space<vmem>>, vector<64x1xf32>
    %93 = vector.broadcast %92 : vector<64x1xf32> to vector<64x256xf32>
    %94 = arith.addf %91, %93 : vector<64x256xf32>
    %cst_49 = arith.constant 0.000000e+00 : f32
    %95 = vector.broadcast %cst_49 : f32 to vector<64x256xf32>
    %96 = arith.maximumf %94, %95 : vector<64x256xf32>
    %97 = vector.extract_strided_slice %96 {offsets = [0, 0], sizes = [64, 128], strides = [1, 1]} : vector<64x256xf32> to vector<64x128xf32>
    %cst_50 = arith.constant dense<0xFF800000> : vector<64xf32>
    %98 = vector.multi_reduction <maximumf>, %97, %cst_50 [1] : vector<64x128xf32> to vector<64xf32>
    %99 = vector.shape_cast %98 : vector<64xf32> to vector<64x1xf32>
    %c0_51 = arith.constant 0 : index
    %c0_52 = arith.constant 0 : index
    %100 = vector.load %arg22[%c0_51, %c0_52] : memref<64x2xf32, #tpu.memory_space<vmem>>, vector<64x1xf32>
    tpu.vector_store %arg22[%c0_51, %c0_52], %99 {strides = array<i32>} : memref<64x2xf32, #tpu.memory_space<vmem>>, vector<64x1xf32>,
    %101 = vector.extract_strided_slice %96 {offsets = [0, 128], sizes = [64, 128], strides = [1, 1]} : vector<64x256xf32> to vector<64x128xf32>
    %cst_53 = arith.constant dense<0xFF800000> : vector<64xf32>
    %102 = vector.multi_reduction <maximumf>, %101, %cst_53 [1] : vector<64x128xf32> to vector<64xf32>
    %103 = vector.shape_cast %102 : vector<64xf32> to vector<64x1xf32>
    %c0_54 = arith.constant 0 : index
    %c1_55 = arith.constant 1 : index
    %104 = vector.load %arg22[%c0_54, %c1_55] : memref<64x2xf32, #tpu.memory_space<vmem>>, vector<64x1xf32>
    tpu.vector_store %arg22[%c0_54, %c1_55], %103 {strides = array<i32>} : memref<64x2xf32, #tpu.memory_space<vmem>>, vector<64x1xf32>,
    %c0_56 = arith.constant 0 : index
    %c0_57 = arith.constant 0 : index
    %105 = vector.load %arg16[%c0_56, %c0_57] : memref<64x64xf32, #tpu.memory_space<vmem>>, vector<64x64xf32>
    %c0_58 = arith.constant 0 : index
    %c0_59 = arith.constant 0 : index
    %106 = vector.load %arg22[%c0_58, %c0_59] : memref<64x2xf32, #tpu.memory_space<vmem>>, vector<64x2xf32>
    %cst_60 = arith.constant dense<0.000000e+00> : vector<64x2xf32>
    %107 = tpu.matmul %105, %106, %cst_60 {dimension_numbers = #tpu.dot_dimension_numbers<[1], [0], [0], [1], [0, 0, 1, 1], [], []>} : vector<64x64xf32>, vector<64x2xf32>, vector<64x2xf32> -> vector<64x2xf32>
    %c0_61 = arith.constant 0 : index
    %c0_62 = arith.constant 0 : index
    %108 = vector.load %arg17[%c0_61, %c0_62] : memref<64x1xf32, #tpu.memory_space<vmem>>, vector<64x1xf32>
    %109 = vector.broadcast %108 : vector<64x1xf32> to vector<64x2xf32>
    %110 = arith.addf %107, %109 : vector<64x2xf32>
    %cst_63 = arith.constant 0.000000e+00 : f32
    %111 = vector.broadcast %cst_63 : f32 to vector<64x2xf32>
    %112 = arith.maximumf %110, %111 : vector<64x2xf32>
    %c0_64 = arith.constant 0 : index
    %c0_65 = arith.constant 0 : index
    %113 = vector.load %arg18[%c0_64, %c0_65] : memref<1x64xf32, #tpu.memory_space<vmem>>, vector<1x64xf32>
    %cst_66 = arith.constant dense<0.000000e+00> : vector<1x2xf32>
    %114 = tpu.matmul %113, %112, %cst_66 {dimension_numbers = #tpu.dot_dimension_numbers<[1], [0], [0], [1], [0, 0, 1, 1], [], []>} : vector<1x64xf32>, vector<64x2xf32>, vector<1x2xf32> -> vector<1x2xf32>
    %c0_67 = arith.constant 0 : index
    %c0_68 = arith.constant 0 : index
    %115 = vector.load %arg19[%c0_67, %c0_68] : memref<1x1xf32, #tpu.memory_space<vmem>>, vector<1x1xf32>
    %116 = vector.broadcast %115 : vector<1x1xf32> to vector<1x2xf32>
    %117 = arith.addf %114, %116 : vector<1x2xf32>
    %c0_69 = arith.constant 0 : index
    %c0_70 = arith.constant 0 : index
    %c0_71 = arith.constant 0 : index
    %118 = vector.load %arg20[%c0_69, %c0_70, %c0_71] : memref<1x1x2xf32, #tpu.memory_space<vmem>>, vector<1x1x2xf32>
    %119 = vector.shape_cast %118 : vector<1x1x2xf32> to vector<1x2xf32>
    %120 = vector.shape_cast %117 : vector<1x2xf32> to vector<1x1x2xf32>
    tpu.vector_store %arg20[%c0_69, %c0_70, %c0_71], %120 {strides = array<i32>} : memref<1x1x2xf32, #tpu.memory_space<vmem>>, vector<1x1x2xf32>,
    return
  }
  func.func @transform_0(%arg0: i32) -> (i32, i32) {
    %c0_i32 = arith.constant 0 : i32
    %c0_i32_0 = arith.constant 0 : i32
    return %c0_i32, %arg0 : i32, i32
  }
  func.func @transform_1(%arg0: i32) -> (i32, i32) {
    %c0_i32 = arith.constant 0 : i32
    %c0_i32_0 = arith.constant 0 : i32
    %c0_i32_1 = arith.constant 0 : i32
    return %c0_i32, %c0_i32_0 : i32, i32
  }
  func.func @transform_2(%arg0: i32) -> (i32, i32) {
    %c0_i32 = arith.constant 0 : i32
    %c0_i32_0 = arith.constant 0 : i32
    %c0_i32_1 = arith.constant 0 : i32
    return %c0_i32, %c0_i32_0 : i32, i32
  }
  func.func @transform_3(%arg0: i32) -> (i32, i32) {
    %c0_i32 = arith.constant 0 : i32
    %c0_i32_0 = arith.constant 0 : i32
    %c0_i32_1 = arith.constant 0 : i32
    return %c0_i32, %c0_i32_0 : i32, i32
  }
  func.func @transform_4(%arg0: i32) -> (i32, i32) {
    %c0_i32 = arith.constant 0 : i32
    %c0_i32_0 = arith.constant 0 : i32
    %c0_i32_1 = arith.constant 0 : i32
    return %c0_i32, %c0_i32_0 : i32, i32
  }
  func.func @transform_5(%arg0: i32) -> (i32, i32) {
    %c0_i32 = arith.constant 0 : i32
    %c0_i32_0 = arith.constant 0 : i32
    %c0_i32_1 = arith.constant 0 : i32
    return %c0_i32, %c0_i32_0 : i32, i32
  }
  func.func @transform_6(%arg0: i32) -> (i32, i32) {
    %c0_i32 = arith.constant 0 : i32
    %c0_i32_0 = arith.constant 0 : i32
    %c0_i32_1 = arith.constant 0 : i32
    return %c0_i32, %c0_i32_0 : i32, i32
  }
  func.func @transform_7(%arg0: i32) -> (i32, i32) {
    %c0_i32 = arith.constant 0 : i32
    %c0_i32_0 = arith.constant 0 : i32
    %c0_i32_1 = arith.constant 0 : i32
    return %c0_i32, %c0_i32_0 : i32, i32
  }
  func.func @transform_8(%arg0: i32) -> (i32, i32) {
    %c0_i32 = arith.constant 0 : i32
    %c0_i32_0 = arith.constant 0 : i32
    %c0_i32_1 = arith.constant 0 : i32
    return %c0_i32, %c0_i32_0 : i32, i32
  }
  func.func @transform_9(%arg0: i32) -> (i32, i32) {
    %c0_i32 = arith.constant 0 : i32
    %c0_i32_0 = arith.constant 0 : i32
    %c0_i32_1 = arith.constant 0 : i32
    return %c0_i32, %c0_i32_0 : i32, i32
  }
  func.func @transform_10(%arg0: i32) -> (i32, i32) {
    %c0_i32 = arith.constant 0 : i32
    %c0_i32_0 = arith.constant 0 : i32
    %c0_i32_1 = arith.constant 0 : i32
    return %c0_i32, %c0_i32_0 : i32, i32
  }
  func.func @transform_11(%arg0: i32) -> (i32, i32) {
    %c0_i32 = arith.constant 0 : i32
    %c0_i32_0 = arith.constant 0 : i32
    %c0_i32_1 = arith.constant 0 : i32
    return %c0_i32, %c0_i32_0 : i32, i32
  }
  func.func @transform_12(%arg0: i32) -> (i32, i32) {
    %c0_i32 = arith.constant 0 : i32
    %c0_i32_0 = arith.constant 0 : i32
    %c0_i32_1 = arith.constant 0 : i32
    return %c0_i32, %c0_i32_0 : i32, i32
  }
  func.func @transform_13(%arg0: i32) -> (i32, i32) {
    %c0_i32 = arith.constant 0 : i32
    %c0_i32_0 = arith.constant 0 : i32
    %c0_i32_1 = arith.constant 0 : i32
    return %c0_i32, %c0_i32_0 : i32, i32
  }
  func.func @transform_14(%arg0: i32) -> (i32, i32) {
    %c0_i32 = arith.constant 0 : i32
    %c0_i32_0 = arith.constant 0 : i32
    %c0_i32_1 = arith.constant 0 : i32
    return %c0_i32, %c0_i32_0 : i32, i32
  }
  func.func @transform_15(%arg0: i32) -> (i32, i32) {
    %c0_i32 = arith.constant 0 : i32
    %c0_i32_0 = arith.constant 0 : i32
    %c0_i32_1 = arith.constant 0 : i32
    return %c0_i32, %c0_i32_0 : i32, i32
  }
  func.func @transform_16(%arg0: i32) -> (i32, i32) {
    %c0_i32 = arith.constant 0 : i32
    %c0_i32_0 = arith.constant 0 : i32
    %c0_i32_1 = arith.constant 0 : i32
    return %c0_i32, %c0_i32_0 : i32, i32
  }
  func.func @transform_17(%arg0: i32) -> (i32, i32) {
    %c0_i32 = arith.constant 0 : i32
    %c0_i32_0 = arith.constant 0 : i32
    %c0_i32_1 = arith.constant 0 : i32
    return %c0_i32, %c0_i32_0 : i32, i32
  }
  func.func @transform_18(%arg0: i32) -> (i32, i32) {
    %c0_i32 = arith.constant 0 : i32
    %c0_i32_0 = arith.constant 0 : i32
    %c0_i32_1 = arith.constant 0 : i32
    return %c0_i32, %c0_i32_0 : i32, i32
  }
  func.func @transform_19(%arg0: i32) -> (i32, i32, i32) {
    %c0_i32 = arith.constant 0 : i32
    %c0_i32_0 = arith.constant 0 : i32
    %c0_i32_1 = arith.constant 0 : i32
    return %arg0, %c0_i32, %c0_i32_0 : i32, i32, i32
  }
}

</mosaic_0001>

<llo_original>
// kernel: tpu_custom_call.1
$region0: #{tpu_custom_call.1}
  #allocation0 [shape = 'u32[]', space=smem, size = 0x4, offset = 0x4, fixed_abs, tag = 'smem constant byte address 0x4 - core index']
  #allocation1 [shape = 'u32[144,128]{1,0:T(1,128)}', space=vmem, size = 0x12000, scoped, tag = 'internal scratch']
  #allocation2 [shape = 'f32[64,2]{1,0:T(8,128)}', space=vmem, size = 0x8000, scoped, tag = 'scratch operand']
  #allocation3 [shape = 'f32[64,2]{1,0:T(8,128)}', space=vmem, size = 0x8000, scoped, tag = 'scratch operand']
  #allocation4 [shape = 'f32[1,1]{1,0:T(1,128)S(1)}', space=vmem, size = 0x200, scoped, tag = 'scoped memory for tpu_custom_call.1']
  %s0 = inlined_call_operand.vmem [shape: bf16[4,256], index: 0, kind: input, shape index: {}]
  %s1 = inlined_call_operand.vmem [shape: f32[64,4], index: 1, kind: input, shape index: {}]
  %s2 = inlined_call_operand.vmem [shape: f32[64,1], index: 2, kind: input, shape index: {}]
  %s3 = inlined_call_operand.vmem [shape: f32[64,64], index: 3, kind: input, shape index: {}]
  %s4 = inlined_call_operand.vmem [shape: f32[64,1], index: 4, kind: input, shape index: {}]
  %s5 = inlined_call_operand.vmem [shape: f32[64,64], index: 5, kind: input, shape index: {}]
  %s6 = inlined_call_operand.vmem [shape: f32[64,1], index: 6, kind: input, shape index: {}]
  %s7 = inlined_call_operand.vmem [shape: f32[64,64], index: 7, kind: input, shape index: {}]
  %s8 = inlined_call_operand.vmem [shape: f32[64,1], index: 8, kind: input, shape index: {}]
  %s9 = inlined_call_operand.vmem [shape: f32[16,64], index: 9, kind: input, shape index: {}]
  %s10 = inlined_call_operand.vmem [shape: f32[16,1], index: 10, kind: input, shape index: {}]
  %s11 = inlined_call_operand.vmem [shape: f32[64,4], index: 11, kind: input, shape index: {}]
  %s12 = inlined_call_operand.vmem [shape: f32[64,1], index: 12, kind: input, shape index: {}]
  %s13 = inlined_call_operand.vmem [shape: f32[64,64], index: 13, kind: input, shape index: {}]
  %s14 = inlined_call_operand.vmem [shape: f32[64,1], index: 14, kind: input, shape index: {}]
  %s15 = inlined_call_operand.vmem [shape: f32[64,64], index: 15, kind: input, shape index: {}]
  %s16 = inlined_call_operand.vmem [shape: f32[64,1], index: 16, kind: input, shape index: {}]
  %s17 = inlined_call_operand.vmem [shape: f32[1,64], index: 17, kind: input, shape index: {}]
  %s18 = inlined_call_operand.<no memory space> [shape: f32[1,1], index: 18, kind: input, shape index: {}]
  %s19 = inlined_call_operand.hbm [shape: f32[1,1,2], index: 19, kind: output, shape index: {}]
  %s20 = sld [smem:[#allocation0]]
  $region86: #{tpu_custom_call.1} parent=0
    _
  %s22 = ssub.s32 1, %s20
  %s23 = scalar_select 0, %s22, %s20
  %v24 = vstv %s18
  %25 = vst [vmem:[#allocation4] sm:$0x1] %v24
  $region1: #{tpu_custom_call.1} parent=0
    #allocation5 [shape = 'u8[512]{0}', space=vmem, size = 0x400, scoped, tag = 'output window, operand 0, single buffered']
    #allocation6 [shape = 's32[1]{0}', space=sflag, size = 0x4, scoped, tag = 'scoped memory for tpu_custom_call.1']
    %26 = vsyncpa [#allocation6], 0
    // Predicated region
    $region2: #{tpu_custom_call.1} parent=1 // pred_check
      _
    $region3: #{tpu_custom_call.1} parent=1 // pred_check_branch
      %28 = sbr.rel (0) target = $region5
    $region4: #{tpu_custom_call.1} parent=1 // pred_region
      _
    $region5: #{tpu_custom_call.1} parent=1 // pred_fallthru
      _
    // Predicated region
    $region6: #{tpu_custom_call.1} parent=1 // pred_check
      _
    $region7: #{tpu_custom_call.1} parent=1 // pred_check_branch
      %30 = sbr.rel (0) target = $region9
    $region8: #{tpu_custom_call.1} parent=1 // pred_region
      _
    $region9: #{tpu_custom_call.1} parent=1 // pred_fallthru
      _
    // Predicated region
    $region10: #{tpu_custom_call.1} parent=1 // pred_check
      _
    $region11: #{tpu_custom_call.1} parent=1 // pred_check_branch
      %32 = sbr.rel (0) target = $region13
    $region12: #{tpu_custom_call.1} parent=1 // pred_region
      _
    $region13: #{tpu_custom_call.1} parent=1 // pred_fallthru
      _
    // Predicated region
    $region14: #{tpu_custom_call.1} parent=1 // pred_check
      _
    $region15: #{tpu_custom_call.1} parent=1 // pred_check_branch
      %34 = sbr.rel (0) target = $region17
    $region16: #{tpu_custom_call.1} parent=1 // pred_region
      _
    $region17: #{tpu_custom_call.1} parent=1 // pred_fallthru
      _
    // Predicated region
    $region18: #{tpu_custom_call.1} parent=1 // pred_check
      _
    $region19: #{tpu_custom_call.1} parent=1 // pred_check_branch
      %36 = sbr.rel (0) target = $region21
    $region20: #{tpu_custom_call.1} parent=1 // pred_region
      _
    $region21: #{tpu_custom_call.1} parent=1 // pred_fallthru
      _
    // Predicated region
    $region22: #{tpu_custom_call.1} parent=1 // pred_check
      _
    $region23: #{tpu_custom_call.1} parent=1 // pred_check_branch
      %38 = sbr.rel (0) target = $region25
    $region24: #{tpu_custom_call.1} parent=1 // pred_region
      _
    $region25: #{tpu_custom_call.1} parent=1 // pred_fallthru
      _
    // Predicated region
    $region26: #{tpu_custom_call.1} parent=1 // pred_check
      _
    $region27: #{tpu_custom_call.1} parent=1 // pred_check_branch
      %40 = sbr.rel (0) target = $region29
    $region28: #{tpu_custom_call.1} parent=1 // pred_region
      _
    $region29: #{tpu_custom_call.1} parent=1 // pred_fallthru
      _
    // Predicated region
    $region30: #{tpu_custom_call.1} parent=1 // pred_check
      _
    $region31: #{tpu_custom_call.1} parent=1 // pred_check_branch
      %42 = sbr.rel (0) target = $region33
    $region32: #{tpu_custom_call.1} parent=1 // pred_region
      _
    $region33: #{tpu_custom_call.1} parent=1 // pred_fallthru
      _
    // Predicated region
    $region34: #{tpu_custom_call.1} parent=1 // pred_check
      _
    $region35: #{tpu_custom_call.1} parent=1 // pred_check_branch
      %44 = sbr.rel (0) target = $region37
    $region36: #{tpu_custom_call.1} parent=1 // pred_region
      _
    $region37: #{tpu_custom_call.1} parent=1 // pred_fallthru
      _
    // Predicated region
    $region38: #{tpu_custom_call.1} parent=1 // pred_check
      _
    $region39: #{tpu_custom_call.1} parent=1 // pred_check_branch
      %46 = sbr.rel (0) target = $region41
    $region40: #{tpu_custom_call.1} parent=1 // pred_region
      _
    $region41: #{tpu_custom_call.1} parent=1 // pred_fallthru
      _
    // Predicated region
    $region42: #{tpu_custom_call.1} parent=1 // pred_check
      _
    $region43: #{tpu_custom_call.1} parent=1 // pred_check_branch
      %48 = sbr.rel (0) target = $region45
    $region44: #{tpu_custom_call.1} parent=1 // pred_region
      _
    $region45: #{tpu_custom_call.1} parent=1 // pred_fallthru
      _
    // Predicated region
    $region46: #{tpu_custom_call.1} parent=1 // pred_check
      _
    $region47: #{tpu_custom_call.1} parent=1 // pred_check_branch
      %50 = sbr.rel (0) target = $region49
    $region48: #{tpu_custom_call.1} parent=1 // pred_region
      _
    $region49: #{tpu_custom_call.1} parent=1 // pred_fallthru
      _
    // Predicated region
    $region50: #{tpu_custom_call.1} parent=1 // pred_check
      _
    $region51: #{tpu_custom_call.1} parent=1 // pred_check_branch
      %52 = sbr.rel (0) target = $region53
    $region52: #{tpu_custom_call.1} parent=1 // pred_region
      _
    $region53: #{tpu_custom_call.1} parent=1 // pred_fallthru
      _
    // Predicated region
    $region54: #{tpu_custom_call.1} parent=1 // pred_check
      _
    $region55: #{tpu_custom_call.1} parent=1 // pred_check_branch
      %54 = sbr.rel (0) target = $region57
    $region56: #{tpu_custom_call.1} parent=1 // pred_region
      _
    $region57: #{tpu_custom_call.1} parent=1 // pred_fallthru
      _
    // Predicated region
    $region58: #{tpu_custom_call.1} parent=1 // pred_check
      _
    $region59: #{tpu_custom_call.1} parent=1 // pred_check_branch
      %56 = sbr.rel (0) target = $region61
    $region60: #{tpu_custom_call.1} parent=1 // pred_region
      _
    $region61: #{tpu_custom_call.1} parent=1 // pred_fallthru
      _
    // Predicated region
    $region62: #{tpu_custom_call.1} parent=1 // pred_check
      _
    $region63: #{tpu_custom_call.1} parent=1 // pred_check_branch
      %58 = sbr.rel (0) target = $region65
    $region64: #{tpu_custom_call.1} parent=1 // pred_region
      _
    $region65: #{tpu_custom_call.1} parent=1 // pred_fallthru
      _
    // Predicated region
    $region66: #{tpu_custom_call.1} parent=1 // pred_check
      _
    $region67: #{tpu_custom_call.1} parent=1 // pred_check_branch
      %60 = sbr.rel (0) target = $region69
    $region68: #{tpu_custom_call.1} parent=1 // pred_region
      _
    $region69: #{tpu_custom_call.1} parent=1 // pred_fallthru
      _
    // Predicated region
    $region70: #{tpu_custom_call.1} parent=1 // pred_check
      _
    $region71: #{tpu_custom_call.1} parent=1 // pred_check_branch
      %62 = sbr.rel (0) target = $region73
    $region72: #{tpu_custom_call.1} parent=1 // pred_region
      _
    $region73: #{tpu_custom_call.1} parent=1 // pred_fallthru
      _
    // Predicated region
    $region74: #{tpu_custom_call.1} parent=1 // pred_check
      _
    $region75: #{tpu_custom_call.1} parent=1 // pred_check_branch
      %64 = sbr.rel (0) target = $region77
    $region76: #{tpu_custom_call.1} parent=1 // pred_region
      _
    $region77: #{tpu_custom_call.1} parent=1 // pred_fallthru
      _
    %v66 = vld [vmem:[%s0] sm:$0xf]
    %v67 = vld [vmem:[%s1] sm:$0xff]
    %v68 = vld [vmem:[%s1 + $0x8] sm:$0xff]
    %v69 = vld [vmem:[%s1 + $0x10] sm:$0xff]
    %v70 = vld [vmem:[%s1 + $0x18] sm:$0xff]
    %v71 = vld [vmem:[%s1 + $0x20] sm:$0xff]
    %v72 = vld [vmem:[%s1 + $0x28] sm:$0xff]
    %v73 = vld [vmem:[%s1 + $0x30] sm:$0xff]
    %v74 = vld [vmem:[%s1 + $0x38] sm:$0xff]
    %v75 = vpack.c.bf16 %v68, %v67
    %v76 = vpack.c.bf16 %v70, %v69
    %v77 = vpack.c.bf16 %v72, %v71
    %v78 = vpack.c.bf16 %v74, %v73
    %v79 = vld [vmem:[%s2] sm:$0xff]
    %v80 = vld [vmem:[%s2 + $0x8] sm:$0xff]
    %v81 = vld [vmem:[%s2 + $0x10] sm:$0xff]
    %v82 = vld [vmem:[%s2 + $0x18] sm:$0xff]
    %v83 = vld [vmem:[%s2 + $0x20] sm:$0xff]
    %v84 = vld [vmem:[%s2 + $0x28] sm:$0xff]
    %v85 = vld [vmem:[%s2 + $0x30] sm:$0xff]
    %v86 = vld [vmem:[%s2 + $0x38] sm:$0xff]
    %88 = vset.pattern.permute.xlu0 0
    %89 = vperm.xlu0 %88, %v79
    %v90 = vpop.permute.xlu0 %89
    %93 = vset.pattern.permute.xlu0 0
    %94 = vperm.xlu0 %93, %v80
    %v95 = vpop.permute.xlu0 %94
    %98 = vset.pattern.permute.xlu0 0
    %99 = vperm.xlu0 %98, %v81
    %v100 = vpop.permute.xlu0 %99
    %103 = vset.pattern.permute.xlu0 0
    %104 = vperm.xlu0 %103, %v82
    %v105 = vpop.permute.xlu0 %104
    %108 = vset.pattern.permute.xlu0 0
    %109 = vperm.xlu0 %108, %v83
    %v110 = vpop.permute.xlu0 %109
    %113 = vset.pattern.permute.xlu0 0
    %114 = vperm.xlu0 %113, %v84
    %v115 = vpop.permute.xlu0 %114
    %118 = vset.pattern.permute.xlu0 0
    %119 = vperm.xlu0 %118, %v85
    %v120 = vpop.permute.xlu0 %119
    %123 = vset.pattern.permute.xlu0 0
    %124 = vperm.xlu0 %123, %v86
    %v125 = vpop.permute.xlu0 %124
    %v129 = vunpack.c.l.s4 1983009808
    %v130 = vunpack.c.0.s8 %v129
    %v131 = vlaneseq
    %v132 = vshrl.u32 %v131, 7
    %v133 = vsub.s32 %v130, %v132
    %v134 = vrot.slane %v66, %v133
    %v135 = vcombine.high %v134, %v134
    %vm136 = vcmask 31744
    %v138 = vsel %vm136, %v75, 0
    %v141 = vsel %vm136, %v76, 0
    %v144 = vsel %vm136, %v77, 0
    %v147 = vsel %vm136, %v78, 0
    %vm149 = vcmask 1041408
    %v151 = vsel %vm149, %v134, 0
    %v154 = vsel %vm149, %v135, 0
    %156 = vmatprep.subr.bf16.mxu0 0
    %157 = vmatpush1.bf16.msra.mxu0 0
    %158 = vmatprep.subr.bf16.mxu0 0
    %159 = vmatpush1.bf16.msra.mxu0 0
    %160 = vmatprep.subr.bf16.mxu0 0
    %161 = vmatpush1.bf16.msra.mxu0 0
    %162 = vmatprep.subr.bf16.mxu0 0
    %163 = vmatpush1.bf16.msra.mxu0 0
    %164 = vmatprep.subr.bf16.mxu0 0
    %165 = vmatpush1.bf16.msra.mxu0 0
    %166 = vmatprep.subr.bf16.mxu0 0
    %167 = vmatpush1.bf16.msra.mxu0 0
    %168 = vmatprep.subr.bf16.mxu0 0
    %169 = vmatpush1.bf16.msra.mxu0 0
    %170 = vmatprep.subr.bf16.mxu0 %v154
    %171 = vmatpush1.bf16.msra.mxu0 %v151
    %172 = vmatprep.subr.bf16.mxu0 0
    %173 = vmatpush2.bf16.msra.mxu0 0
    %174 = vmatprep.subr.bf16.mxu0 0
    %175 = vmatpush2.bf16.msra.mxu0 0
    %176 = vmatprep.subr.bf16.mxu0 0
    %177 = vmatpush2.bf16.msra.mxu0 0
    %178 = vmatprep.subr.bf16.mxu0 0
    %179 = vmatpush2.bf16.msra.mxu0 0
    %180 = vmatprep.subr.bf16.mxu0 0
    %181 = vmatpush2.bf16.msra.mxu0 0
    %182 = vmatprep.subr.bf16.mxu0 0
    %183 = vmatpush2.bf16.msra.mxu0 0
    %184 = vmatprep.subr.bf16.mxu0 0
    %185 = vmatpush2.bf16.msra.mxu0 0
    %186 = vmatprep.subr.bf16.mxu0 0
    %187 = vmatpush2.bf16.msra.mxu0 0
    %188 = vmatprep.mubr.bf16.mxu0 0
    %189 = vmatmul.mubr.bf16.gmra.mxu0 %v138
    %v190 = vpop.f32.mrf.mxu0
    %v191 = vadd.f32 %v90, %v190
    %v192 = vpop.f32.mrf.mxu0
    %v193 = vadd.f32 %v90, %v192
    %v194 = vpop.f32.mrf.mxu0
    %v195 = vadd.f32 %v95, %v194
    %v196 = vpop.f32.mrf.mxu0
    %v197 = vadd.f32 %v95, %v196
    %198 = vmatprep.mubr.bf16.mxu0 0
    %199 = vmatmul.mubr.bf16.gmra.mxu0 %v141
    %v200 = vpop.f32.mrf.mxu0
    %v201 = vadd.f32 %v100, %v200
    %v202 = vpop.f32.mrf.mxu0
    %v203 = vadd.f32 %v100, %v202
    %v204 = vpop.f32.mrf.mxu0
    %v205 = vadd.f32 %v105, %v204
    %v206 = vpop.f32.mrf.mxu0
    %v207 = vadd.f32 %v105, %v206
    %208 = vmatprep.mubr.bf16.mxu0 0
    %209 = vmatmul.mubr.bf16.gmra.mxu0 %v144
    %v210 = vpop.f32.mrf.mxu0
    %v211 = vadd.f32 %v110, %v210
    %v212 = vpop.f32.mrf.mxu0
    %v213 = vadd.f32 %v110, %v212
    %v214 = vpop.f32.mrf.mxu0
    %v215 = vadd.f32 %v115, %v214
    %v216 = vpop.f32.mrf.mxu0
    %v217 = vadd.f32 %v115, %v216
    %218 = vmatprep.mubr.bf16.mxu0 0
    %219 = vmatmul.mubr.bf16.gmra.mxu0 %v147
    %v220 = vpop.f32.mrf.mxu0
    %v221 = vadd.f32 %v120, %v220
    %v222 = vpop.f32.mrf.mxu0
    %v223 = vadd.f32 %v120, %v222
    %v224 = vpop.f32.mrf.mxu0
    %v225 = vadd.f32 %v125, %v224
    %v226 = vpop.f32.mrf.mxu0
    %v227 = vadd.f32 %v125, %v226
    %228 = vdwg.mxu0
    %v229 = vmax.f32 %v191, 0.0
    %v230 = vmax.f32 %v193, 0.0
    %v231 = vmax.f32 %v195, 0.0
    %v232 = vmax.f32 %v197, 0.0
    %v233 = vmax.f32 %v201, 0.0
    %v234 = vmax.f32 %v203, 0.0
    %v235 = vmax.f32 %v205, 0.0
    %v236 = vmax.f32 %v207, 0.0
    %v237 = vmax.f32 %v211, 0.0
    %v238 = vmax.f32 %v213, 0.0
    %v239 = vmax.f32 %v215, 0.0
    %v240 = vmax.f32 %v217, 0.0
    %v241 = vmax.f32 %v221, 0.0
    %v242 = vmax.f32 %v223, 0.0
    %v243 = vmax.f32 %v225, 0.0
    %v244 = vmax.f32 %v227, 0.0
    %v245 = vld [vmem:[%s3] sm:$0xff]
    %v246 = vld [vmem:[%s3 + $0x8] sm:$0xff]
    %v247 = vld [vmem:[%s3 + $0x10] sm:$0xff]
    %v248 = vld [vmem:[%s3 + $0x18] sm:$0xff]
    %v249 = vld [vmem:[%s3 + $0x20] sm:$0xff]
    %v250 = vld [vmem:[%s3 + $0x28] sm:$0xff]
    %v251 = vld [vmem:[%s3 + $0x30] sm:$0xff]
    %v252 = vld [vmem:[%s3 + $0x38] sm:$0xff]
    %v253 = vpack.c.bf16 %v246, %v245
    %v254 = vpack.c.bf16 %v248, %v247
    %v255 = vpack.c.bf16 %v250, %v249
    %v256 = vpack.c.bf16 %v252, %v251
    %v257 = vpack.c.bf16 %v231, %v229
    %v258 = vpack.c.bf16 %v232, %v230
    %v259 = vpack.c.bf16 %v235, %v233
    %v260 = vpack.c.bf16 %v236, %v234
    %v261 = vpack.c.bf16 %v239, %v237
    %v262 = vpack.c.bf16 %v240, %v238
    %v263 = vpack.c.bf16 %v243, %v241
    %v264 = vpack.c.bf16 %v244, %v242
    %v265 = vld [vmem:[%s4] sm:$0xff]
    %v266 = vld [vmem:[%s4 + $0x8] sm:$0xff]
    %v267 = vld [vmem:[%s4 + $0x10] sm:$0xff]
    %v268 = vld [vmem:[%s4 + $0x18] sm:$0xff]
    %v269 = vld [vmem:[%s4 + $0x20] sm:$0xff]
    %v270 = vld [vmem:[%s4 + $0x28] sm:$0xff]
    %v271 = vld [vmem:[%s4 + $0x30] sm:$0xff]
    %v272 = vld [vmem:[%s4 + $0x38] sm:$0xff]
    %274 = vset.pattern.permute.xlu0 0
    %275 = vperm.xlu0 %274, %v265
    %v276 = vpop.permute.xlu0 %275
    %279 = vset.pattern.permute.xlu0 0
    %280 = vperm.xlu0 %279, %v266
    %v281 = vpop.permute.xlu0 %280
    %284 = vset.pattern.permute.xlu0 0
    %285 = vperm.xlu0 %284, %v267
    %v286 = vpop.permute.xlu0 %285
    %289 = vset.pattern.permute.xlu0 0
    %290 = vperm.xlu0 %289, %v268
    %v291 = vpop.permute.xlu0 %290
    %294 = vset.pattern.permute.xlu0 0
    %295 = vperm.xlu0 %294, %v269
    %v296 = vpop.permute.xlu0 %295
    %299 = vset.pattern.permute.xlu0 0
    %300 = vperm.xlu0 %299, %v270
    %v301 = vpop.permute.xlu0 %300
    %304 = vset.pattern.permute.xlu0 0
    %305 = vperm.xlu0 %304, %v271
    %v306 = vpop.permute.xlu0 %305
    %309 = vset.pattern.permute.xlu0 0
    %310 = vperm.xlu0 %309, %v272
    %v311 = vpop.permute.xlu0 %310
    %vm313 = vcmask 523264
    %v315 = vsel %vm313, %v253, 0
    %v318 = vsel %vm313, %v254, 0
    %v321 = vsel %vm313, %v255, 0
    %v324 = vsel %vm313, %v256, 0
    %326 = vmatprep.subr.bf16.mxu0 0
    %327 = vmatpush1.bf16.msra.mxu0 0
    %328 = vmatprep.subr.bf16.mxu0 0
    %329 = vmatpush1.bf16.msra.mxu0 0
    %330 = vmatprep.subr.bf16.mxu0 0
    %331 = vmatpush1.bf16.msra.mxu0 0
    %332 = vmatprep.subr.bf16.mxu0 0
    %333 = vmatpush1.bf16.msra.mxu0 0
    %334 = vmatprep.subr.bf16.mxu0 %v264
    %335 = vmatpush1.bf16.msra.mxu0 %v263
    %336 = vmatprep.subr.bf16.mxu0 %v262
    %337 = vmatpush1.bf16.msra.mxu0 %v261
    %338 = vmatprep.subr.bf16.mxu0 %v260
    %339 = vmatpush1.bf16.msra.mxu0 %v259
    %340 = vmatprep.subr.bf16.mxu0 %v258
    %341 = vmatpush1.bf16.msra.mxu0 %v257
    %342 = vmatprep.subr.bf16.mxu0 0
    %343 = vmatpush2.bf16.msra.mxu0 0
    %344 = vmatprep.subr.bf16.mxu0 0
    %345 = vmatpush2.bf16.msra.mxu0 0
    %346 = vmatprep.subr.bf16.mxu0 0
    %347 = vmatpush2.bf16.msra.mxu0 0
    %348 = vmatprep.subr.bf16.mxu0 0
    %349 = vmatpush2.bf16.msra.mxu0 0
    %350 = vmatprep.subr.bf16.mxu0 0
    %351 = vmatpush2.bf16.msra.mxu0 0
    %352 = vmatprep.subr.bf16.mxu0 0
    %353 = vmatpush2.bf16.msra.mxu0 0
    %354 = vmatprep.subr.bf16.mxu0 0
    %355 = vmatpush2.bf16.msra.mxu0 0
    %356 = vmatprep.subr.bf16.mxu0 0
    %357 = vmatpush2.bf16.msra.mxu0 0
    %358 = vmatprep.mubr.bf16.mxu0 0
    %359 = vmatmul.mubr.bf16.gmra.mxu0 %v315
    %v360 = vpop.f32.mrf.mxu0
    %v361 = vadd.f32 %v276, %v360
    %v362 = vpop.f32.mrf.mxu0
    %v363 = vadd.f32 %v276, %v362
    %v364 = vpop.f32.mrf.mxu0
    %v365 = vadd.f32 %v281, %v364
    %v366 = vpop.f32.mrf.mxu0
    %v367 = vadd.f32 %v281, %v366
    %368 = vmatprep.mubr.bf16.mxu0 0
    %369 = vmatmul.mubr.bf16.gmra.mxu0 %v318
    %v370 = vpop.f32.mrf.mxu0
    %v371 = vadd.f32 %v286, %v370
    %v372 = vpop.f32.mrf.mxu0
    %v373 = vadd.f32 %v286, %v372
    %v374 = vpop.f32.mrf.mxu0
    %v375 = vadd.f32 %v291, %v374
    %v376 = vpop.f32.mrf.mxu0
    %v377 = vadd.f32 %v291, %v376
    %378 = vmatprep.mubr.bf16.mxu0 0
    %379 = vmatmul.mubr.bf16.gmra.mxu0 %v321
    %v380 = vpop.f32.mrf.mxu0
    %v381 = vadd.f32 %v296, %v380
    %v382 = vpop.f32.mrf.mxu0
    %v383 = vadd.f32 %v296, %v382
    %v384 = vpop.f32.mrf.mxu0
    %v385 = vadd.f32 %v301, %v384
    %v386 = vpop.f32.mrf.mxu0
    %v387 = vadd.f32 %v301, %v386
    %388 = vmatprep.mubr.bf16.mxu0 0
    %389 = vmatmul.mubr.bf16.gmra.mxu0 %v324
    %v390 = vpop.f32.mrf.mxu0
    %v391 = vadd.f32 %v306, %v390
    %v392 = vpop.f32.mrf.mxu0
    %v393 = vadd.f32 %v306, %v392
    %v394 = vpop.f32.mrf.mxu0
    %v395 = vadd.f32 %v311, %v394
    %v396 = vpop.f32.mrf.mxu0
    %v397 = vadd.f32 %v311, %v396
    %398 = vdwg.mxu0
    %v399 = vmax.f32 %v361, 0.0
    %v400 = vmax.f32 %v363, 0.0
    %v401 = vmax.f32 %v365, 0.0
    %v402 = vmax.f32 %v367, 0.0
    %v403 = vmax.f32 %v371, 0.0
    %v404 = vmax.f32 %v373, 0.0
    %v405 = vmax.f32 %v375, 0.0
    %v406 = vmax.f32 %v377, 0.0
    %v407 = vmax.f32 %v381, 0.0
    %v408 = vmax.f32 %v383, 0.0
    %v409 = vmax.f32 %v385, 0.0
    %v410 = vmax.f32 %v387, 0.0
    %v411 = vmax.f32 %v391, 0.0
    %v412 = vmax.f32 %v393, 0.0
    %v413 = vmax.f32 %v395, 0.0
    %v414 = vmax.f32 %v397, 0.0
    %415 = vmax.xlane.f32.xlu0 %v399
    %v416 = vpop.xlane.xlu0 %415
    %417 = vmax.xlane.f32.xlu0 %v401
    %v418 = vpop.xlane.xlu0 %417
    %419 = vmax.xlane.f32.xlu0 %v403
    %v420 = vpop.xlane.xlu0 %419
    %421 = vmax.xlane.f32.xlu0 %v405
    %v422 = vpop.xlane.xlu0 %421
    %423 = vmax.xlane.f32.xlu0 %v407
    %v424 = vpop.xlane.xlu0 %423
    %425 = vmax.xlane.f32.xlu0 %v409
    %v426 = vpop.xlane.xlu0 %425
    %427 = vmax.xlane.f32.xlu0 %v411
    %v428 = vpop.xlane.xlu0 %427
    %429 = vmax.xlane.f32.xlu0 %v413
    %v430 = vpop.xlane.xlu0 %429
    %vm431 = vcmask 7168
    %432 = vst.msk [vmem:[#allocation2] sm:$0xff] %vm431, %v416
    %433 = vst.msk [vmem:[#allocation2 + $0x8] sm:$0xff] %vm431, %v418
    %434 = vst.msk [vmem:[#allocation2 + $0x10] sm:$0xff] %vm431, %v420
    %435 = vst.msk [vmem:[#allocation2 + $0x18] sm:$0xff] %vm431, %v422
    %436 = vst.msk [vmem:[#allocation2 + $0x20] sm:$0xff] %vm431, %v424
    %437 = vst.msk [vmem:[#allocation2 + $0x28] sm:$0xff] %vm431, %v426
    %438 = vst.msk [vmem:[#allocation2 + $0x30] sm:$0xff] %vm431, %v428
    %439 = vst.msk [vmem:[#allocation2 + $0x38] sm:$0xff] %vm431, %v430
    %440 = vmax.xlane.f32.xlu0 %v400
    %v441 = vpop.xlane.xlu0 %440
    %442 = vmax.xlane.f32.xlu0 %v402
    %v443 = vpop.xlane.xlu0 %442
    %444 = vmax.xlane.f32.xlu0 %v404
    %v445 = vpop.xlane.xlu0 %444
    %446 = vmax.xlane.f32.xlu0 %v406
    %v447 = vpop.xlane.xlu0 %446
    %448 = vmax.xlane.f32.xlu0 %v408
    %v449 = vpop.xlane.xlu0 %448
    %450 = vmax.xlane.f32.xlu0 %v410
    %v451 = vpop.xlane.xlu0 %450
    %452 = vmax.xlane.f32.xlu0 %v412
    %v453 = vpop.xlane.xlu0 %452
    %454 = vmax.xlane.f32.xlu0 %v414
    %v455 = vpop.xlane.xlu0 %454
    %vm456 = vcmask 15368
    %457 = vst.msk [vmem:[#allocation2] sm:$0xff] %vm456, %v441
    %458 = vst.msk [vmem:[#allocation2 + $0x8] sm:$0xff] %vm456, %v443
    %459 = vst.msk [vmem:[#allocation2 + $0x10] sm:$0xff] %vm456, %v445
    %460 = vst.msk [vmem:[#allocation2 + $0x18] sm:$0xff] %vm456, %v447
    %461 = vst.msk [vmem:[#allocation2 + $0x20] sm:$0xff] %vm456, %v449
    %462 = vst.msk [vmem:[#allocation2 + $0x28] sm:$0xff] %vm456, %v451
    %463 = vst.msk [vmem:[#allocation2 + $0x30] sm:$0xff] %vm456, %v453
    %464 = vst.msk [vmem:[#allocation2 + $0x38] sm:$0xff] %vm456, %v455
    %v465 = vld [vmem:[#allocation2] sm:$0xff]
    %v466 = vld [vmem:[#allocation2 + $0x8] sm:$0xff]
    %v467 = vld [vmem:[#allocation2 + $0x10] sm:$0xff]
    %v468 = vld [vmem:[#allocation2 + $0x18] sm:$0xff]
    %v469 = vld [vmem:[#allocation2 + $0x20] sm:$0xff]
    %v470 = vld [vmem:[#allocation2 + $0x28] sm:$0xff]
    %v471 = vld [vmem:[#allocation2 + $0x30] sm:$0xff]
    %v472 = vld [vmem:[#allocation2 + $0x38] sm:$0xff]
    %v473 = vld [vmem:[%s5] sm:$0xff]
    %v474 = vld [vmem:[%s5 + $0x8] sm:$0xff]
    %v475 = vld [vmem:[%s5 + $0x10] sm:$0xff]
    %v476 = vld [vmem:[%s5 + $0x18] sm:$0xff]
    %v477 = vld [vmem:[%s5 + $0x20] sm:$0xff]
    %v478 = vld [vmem:[%s5 + $0x28] sm:$0xff]
    %v479 = vld [vmem:[%s5 + $0x30] sm:$0xff]
    %v480 = vld [vmem:[%s5 + $0x38] sm:$0xff]
    %v481 = vld [vmem:[%s6] sm:$0xff]
    %v482 = vld [vmem:[%s6 + $0x8] sm:$0xff]
    %v483 = vld [vmem:[%s6 + $0x10] sm:$0xff]
    %v484 = vld [vmem:[%s6 + $0x18] sm:$0xff]
    %v485 = vld [vmem:[%s6 + $0x20] sm:$0xff]
    %v486 = vld [vmem:[%s6 + $0x28] sm:$0xff]
    %v487 = vld [vmem:[%s6 + $0x30] sm:$0xff]
    %v488 = vld [vmem:[%s6 + $0x38] sm:$0xff]
    %490 = vset.pattern.permute.xlu0 0
    %491 = vperm.xlu0 %490, %v481
    %v492 = vpop.permute.xlu0 %491
    %495 = vset.pattern.permute.xlu0 0
    %496 = vperm.xlu0 %495, %v482
    %v497 = vpop.permute.xlu0 %496
    %500 = vset.pattern.permute.xlu0 0
    %501 = vperm.xlu0 %500, %v483
    %v502 = vpop.permute.xlu0 %501
    %505 = vset.pattern.permute.xlu0 0
    %506 = vperm.xlu0 %505, %v484
    %v507 = vpop.permute.xlu0 %506
    %510 = vset.pattern.permute.xlu0 0
    %511 = vperm.xlu0 %510, %v485
    %v512 = vpop.permute.xlu0 %511
    %515 = vset.pattern.permute.xlu0 0
    %516 = vperm.xlu0 %515, %v486
    %v517 = vpop.permute.xlu0 %516
    %520 = vset.pattern.permute.xlu0 0
    %521 = vperm.xlu0 %520, %v487
    %v522 = vpop.permute.xlu0 %521
    %525 = vset.pattern.permute.xlu0 0
    %526 = vperm.xlu0 %525, %v488
    %v527 = vpop.permute.xlu0 %526
    %v530 = vsel %vm313, %v473, 0
    %v533 = vsel %vm313, %v474, 0
    %v536 = vsel %vm313, %v475, 0
    %v539 = vsel %vm313, %v476, 0
    %v542 = vsel %vm313, %v477, 0
    %v545 = vsel %vm313, %v478, 0
    %v548 = vsel %vm313, %v479, 0
    %v551 = vsel %vm313, %v480, 0
    %553 = vmatprep.subr.mxu0 0.0
    %554 = vmatpush1.msra.mxu0 0.0
    %555 = vmatprep.subr.mxu0 0.0
    %556 = vmatpush1.msra.mxu0 0.0
    %557 = vmatprep.subr.mxu0 0.0
    %558 = vmatpush1.msra.mxu0 0.0
    %559 = vmatprep.subr.mxu0 0.0
    %560 = vmatpush1.msra.mxu0 0.0
    %561 = vmatprep.subr.mxu0 0.0
    %562 = vmatpush1.msra.mxu0 0.0
    %563 = vmatprep.subr.mxu0 0.0
    %564 = vmatpush1.msra.mxu0 0.0
    %565 = vmatprep.subr.mxu0 0.0
    %566 = vmatpush1.msra.mxu0 0.0
    %567 = vmatprep.subr.mxu0 0.0
    %568 = vmatpush1.msra.mxu0 0.0
    %569 = vmatprep.subr.mxu0 0.0
    %570 = vmatpush1.msra.mxu0 %v472
    %571 = vmatprep.subr.mxu0 0.0
    %572 = vmatpush1.msra.mxu0 %v471
    %573 = vmatprep.subr.mxu0 0.0
    %574 = vmatpush1.msra.mxu0 %v470
    %575 = vmatprep.subr.mxu0 0.0
    %576 = vmatpush1.msra.mxu0 %v469
    %577 = vmatprep.subr.mxu0 0.0
    %578 = vmatpush1.msra.mxu0 %v468
    %579 = vmatprep.subr.mxu0 0.0
    %580 = vmatpush1.msra.mxu0 %v467
    %581 = vmatprep.subr.mxu0 0.0
    %582 = vmatpush1.msra.mxu0 %v466
    %583 = vmatprep.subr.mxu0 0.0
    %584 = vmatpush1.msra.mxu0 %v465
    %585 = vmatprep.subr.mxu0 0.0
    %586 = vmatpush2.msra.mxu0 0.0
    %587 = vmatprep.subr.mxu0 0.0
    %588 = vmatpush2.msra.mxu0 0.0
    %589 = vmatprep.subr.mxu0 0.0
    %590 = vmatpush2.msra.mxu0 0.0
    %591 = vmatprep.subr.mxu0 0.0
    %592 = vmatpush2.msra.mxu0 0.0
    %593 = vmatprep.subr.mxu0 0.0
    %594 = vmatpush2.msra.mxu0 0.0
    %595 = vmatprep.subr.mxu0 0.0
    %596 = vmatpush2.msra.mxu0 0.0
    %597 = vmatprep.subr.mxu0 0.0
    %598 = vmatpush2.msra.mxu0 0.0
    %599 = vmatprep.subr.mxu0 0.0
    %600 = vmatpush2.msra.mxu0 0.0
    %601 = vmatprep.subr.mxu0 0.0
    %602 = vmatpush2.msra.mxu0 0.0
    %603 = vmatprep.subr.mxu0 0.0
    %604 = vmatpush2.msra.mxu0 0.0
    %605 = vmatprep.subr.mxu0 0.0
    %606 = vmatpush2.msra.mxu0 0.0
    %607 = vmatprep.subr.mxu0 0.0
    %608 = vmatpush2.msra.mxu0 0.0
    %609 = vmatprep.subr.mxu0 0.0
    %610 = vmatpush2.msra.mxu0 0.0
    %611 = vmatprep.subr.mxu0 0.0
    %612 = vmatpush2.msra.mxu0 0.0
    %613 = vmatprep.subr.mxu0 0.0
    %614 = vmatpush2.msra.mxu0 0.0
    %615 = vmatprep.subr.mxu0 0.0
    %616 = vmatpush2.msra.mxu0 0.0
    %617 = vmatprep.mubr.f32.mxu0 0.0
    %618 = vmatmul.mubr.f32.gmra.mxu0 %v530
    %v619 = vpop.f32.mrf.mxu0
    %v620 = vadd.f32 %v492, %v619
    %v621 = vpop.f32.mrf.mxu0
    %622 = vmatprep.mubr.f32.mxu0 0.0
    %623 = vmatmul.mubr.f32.gmra.mxu0 %v533
    %v624 = vpop.f32.mrf.mxu0
    %v625 = vadd.f32 %v497, %v624
    %v626 = vpop.f32.mrf.mxu0
    %627 = vmatprep.mubr.f32.mxu0 0.0
    %628 = vmatmul.mubr.f32.gmra.mxu0 %v536
    %v629 = vpop.f32.mrf.mxu0
    %v630 = vadd.f32 %v502, %v629
    %v631 = vpop.f32.mrf.mxu0
    %632 = vmatprep.mubr.f32.mxu0 0.0
    %633 = vmatmul.mubr.f32.gmra.mxu0 %v539
    %v634 = vpop.f32.mrf.mxu0
    %v635 = vadd.f32 %v507, %v634
    %v636 = vpop.f32.mrf.mxu0
    %637 = vmatprep.mubr.f32.mxu0 0.0
    %638 = vmatmul.mubr.f32.gmra.mxu0 %v542
    %v639 = vpop.f32.mrf.mxu0
    %v640 = vadd.f32 %v512, %v639
    %v641 = vpop.f32.mrf.mxu0
    %642 = vmatprep.mubr.f32.mxu0 0.0
    %643 = vmatmul.mubr.f32.gmra.mxu0 %v545
    %v644 = vpop.f32.mrf.mxu0
    %v645 = vadd.f32 %v517, %v644
    %v646 = vpop.f32.mrf.mxu0
    %647 = vmatprep.mubr.f32.mxu0 0.0
    %648 = vmatmul.mubr.f32.gmra.mxu0 %v548
    %v649 = vpop.f32.mrf.mxu0
    %v650 = vadd.f32 %v522, %v649
    %v651 = vpop.f32.mrf.mxu0
    %652 = vmatprep.mubr.f32.mxu0 0.0
    %653 = vmatmul.mubr.f32.gmra.mxu0 %v551
    %v654 = vpop.f32.mrf.mxu0
    %v655 = vadd.f32 %v527, %v654
    %v656 = vpop.f32.mrf.mxu0
    %657 = vdwg.mxu0
    %v658 = vmax.f32 %v620, 0.0
    %v659 = vmax.f32 %v625, 0.0
    %v660 = vmax.f32 %v630, 0.0
    %v661 = vmax.f32 %v635, 0.0
    %v662 = vmax.f32 %v640, 0.0
    %v663 = vmax.f32 %v645, 0.0
    %v664 = vmax.f32 %v650, 0.0
    %v665 = vmax.f32 %v655, 0.0
    %v666 = vld [vmem:[%s7] sm:$0xff]
    %v667 = vld [vmem:[%s7 + $0x8] sm:$0xff]
    %v668 = vld [vmem:[%s7 + $0x10] sm:$0xff]
    %v669 = vld [vmem:[%s7 + $0x18] sm:$0xff]
    %v670 = vld [vmem:[%s7 + $0x20] sm:$0xff]
    %v671 = vld [vmem:[%s7 + $0x28] sm:$0xff]
    %v672 = vld [vmem:[%s7 + $0x30] sm:$0xff]
    %v673 = vld [vmem:[%s7 + $0x38] sm:$0xff]
    %v674 = vld [vmem:[%s8] sm:$0xff]
    %v675 = vld [vmem:[%s8 + $0x8] sm:$0xff]
    %v676 = vld [vmem:[%s8 + $0x10] sm:$0xff]
    %v677 = vld [vmem:[%s8 + $0x18] sm:$0xff]
    %v678 = vld [vmem:[%s8 + $0x20] sm:$0xff]
    %v679 = vld [vmem:[%s8 + $0x28] sm:$0xff]
    %v680 = vld [vmem:[%s8 + $0x30] sm:$0xff]
    %v681 = vld [vmem:[%s8 + $0x38] sm:$0xff]
    %683 = vset.pattern.permute.xlu0 0
    %684 = vperm.xlu0 %683, %v674
    %v685 = vpop.permute.xlu0 %684
    %688 = vset.pattern.permute.xlu0 0
    %689 = vperm.xlu0 %688, %v675
    %v690 = vpop.permute.xlu0 %689
    %693 = vset.pattern.permute.xlu0 0
    %694 = vperm.xlu0 %693, %v676
    %v695 = vpop.permute.xlu0 %694
    %698 = vset.pattern.permute.xlu0 0
    %699 = vperm.xlu0 %698, %v677
    %v700 = vpop.permute.xlu0 %699
    %703 = vset.pattern.permute.xlu0 0
    %704 = vperm.xlu0 %703, %v678
    %v705 = vpop.permute.xlu0 %704
    %708 = vset.pattern.permute.xlu0 0
    %709 = vperm.xlu0 %708, %v679
    %v710 = vpop.permute.xlu0 %709
    %713 = vset.pattern.permute.xlu0 0
    %714 = vperm.xlu0 %713, %v680
    %v715 = vpop.permute.xlu0 %714
    %718 = vset.pattern.permute.xlu0 0
    %719 = vperm.xlu0 %718, %v681
    %v720 = vpop.permute.xlu0 %719
    %v723 = vsel %vm313, %v666, 0
    %v726 = vsel %vm313, %v667, 0
    %v729 = vsel %vm313, %v668, 0
    %v732 = vsel %vm313, %v669, 0
    %v735 = vsel %vm313, %v670, 0
    %v738 = vsel %vm313, %v671, 0
    %v741 = vsel %vm313, %v672, 0
    %v744 = vsel %vm313, %v673, 0
    %746 = vmatprep.subr.mxu0 0.0
    %747 = vmatpush1.msra.mxu0 0.0
    %748 = vmatprep.subr.mxu0 0.0
    %749 = vmatpush1.msra.mxu0 0.0
    %750 = vmatprep.subr.mxu0 0.0
    %751 = vmatpush1.msra.mxu0 0.0
    %752 = vmatprep.subr.mxu0 0.0
    %753 = vmatpush1.msra.mxu0 0.0
    %754 = vmatprep.subr.mxu0 0.0
    %755 = vmatpush1.msra.mxu0 0.0
    %756 = vmatprep.subr.mxu0 0.0
    %757 = vmatpush1.msra.mxu0 0.0
    %758 = vmatprep.subr.mxu0 0.0
    %759 = vmatpush1.msra.mxu0 0.0
    %760 = vmatprep.subr.mxu0 0.0
    %761 = vmatpush1.msra.mxu0 0.0
    %762 = vmatprep.subr.mxu0 0.0
    %763 = vmatpush1.msra.mxu0 %v665
    %764 = vmatprep.subr.mxu0 0.0
    %765 = vmatpush1.msra.mxu0 %v664
    %766 = vmatprep.subr.mxu0 0.0
    %767 = vmatpush1.msra.mxu0 %v663
    %768 = vmatprep.subr.mxu0 0.0
    %769 = vmatpush1.msra.mxu0 %v662
    %770 = vmatprep.subr.mxu0 0.0
    %771 = vmatpush1.msra.mxu0 %v661
    %772 = vmatprep.subr.mxu0 0.0
    %773 = vmatpush1.msra.mxu0 %v660
    %774 = vmatprep.subr.mxu0 0.0
    %775 = vmatpush1.msra.mxu0 %v659
    %776 = vmatprep.subr.mxu0 0.0
    %777 = vmatpush1.msra.mxu0 %v658
    %778 = vmatprep.subr.mxu0 0.0
    %779 = vmatpush2.msra.mxu0 0.0
    %780 = vmatprep.subr.mxu0 0.0
    %781 = vmatpush2.msra.mxu0 0.0
    %782 = vmatprep.subr.mxu0 0.0
    %783 = vmatpush2.msra.mxu0 0.0
    %784 = vmatprep.subr.mxu0 0.0
    %785 = vmatpush2.msra.mxu0 0.0
    %786 = vmatprep.subr.mxu0 0.0
    %787 = vmatpush2.msra.mxu0 0.0
    %788 = vmatprep.subr.mxu0 0.0
    %789 = vmatpush2.msra.mxu0 0.0
    %790 = vmatprep.subr.mxu0 0.0
    %791 = vmatpush2.msra.mxu0 0.0
    %792 = vmatprep.subr.mxu0 0.0
    %793 = vmatpush2.msra.mxu0 0.0
    %794 = vmatprep.subr.mxu0 0.0
    %795 = vmatpush2.msra.mxu0 0.0
    %796 = vmatprep.subr.mxu0 0.0
    %797 = vmatpush2.msra.mxu0 0.0
    %798 = vmatprep.subr.mxu0 0.0
    %799 = vmatpush2.msra.mxu0 0.0
    %800 = vmatprep.subr.mxu0 0.0
    %801 = vmatpush2.msra.mxu0 0.0
    %802 = vmatprep.subr.mxu0 0.0
    %803 = vmatpush2.msra.mxu0 0.0
    %804 = vmatprep.subr.mxu0 0.0
    %805 = vmatpush2.msra.mxu0 0.0
    %806 = vmatprep.subr.mxu0 0.0
    %807 = vmatpush2.msra.mxu0 0.0
    %808 = vmatprep.subr.mxu0 0.0
    %809 = vmatpush2.msra.mxu0 0.0
    %810 = vmatprep.mubr.f32.mxu0 0.0
    %811 = vmatmul.mubr.f32.gmra.mxu0 %v723
    %v812 = vpop.f32.mrf.mxu0
    %v813 = vadd.f32 %v685, %v812
    %v814 = vpop.f32.mrf.mxu0
    %815 = vmatprep.mubr.f32.mxu0 0.0
    %816 = vmatmul.mubr.f32.gmra.mxu0 %v726
    %v817 = vpop.f32.mrf.mxu0
    %v818 = vadd.f32 %v690, %v817
    %v819 = vpop.f32.mrf.mxu0
    %820 = vmatprep.mubr.f32.mxu0 0.0
    %821 = vmatmul.mubr.f32.gmra.mxu0 %v729
    %v822 = vpop.f32.mrf.mxu0
    %v823 = vadd.f32 %v695, %v822
    %v824 = vpop.f32.mrf.mxu0
    %825 = vmatprep.mubr.f32.mxu0 0.0
    %826 = vmatmul.mubr.f32.gmra.mxu0 %v732
    %v827 = vpop.f32.mrf.mxu0
    %v828 = vadd.f32 %v700, %v827
    %v829 = vpop.f32.mrf.mxu0
    %830 = vmatprep.mubr.f32.mxu0 0.0
    %831 = vmatmul.mubr.f32.gmra.mxu0 %v735
    %v832 = vpop.f32.mrf.mxu0
    %v833 = vadd.f32 %v705, %v832
    %v834 = vpop.f32.mrf.mxu0
    %835 = vmatprep.mubr.f32.mxu0 0.0
    %836 = vmatmul.mubr.f32.gmra.mxu0 %v738
    %v837 = vpop.f32.mrf.mxu0
    %v838 = vadd.f32 %v710, %v837
    %v839 = vpop.f32.mrf.mxu0
    %840 = vmatprep.mubr.f32.mxu0 0.0
    %841 = vmatmul.mubr.f32.gmra.mxu0 %v741
    %v842 = vpop.f32.mrf.mxu0
    %v843 = vadd.f32 %v715, %v842
    %v844 = vpop.f32.mrf.mxu0
    %845 = vmatprep.mubr.f32.mxu0 0.0
    %846 = vmatmul.mubr.f32.gmra.mxu0 %v744
    %v847 = vpop.f32.mrf.mxu0
    %v848 = vadd.f32 %v720, %v847
    %v849 = vpop.f32.mrf.mxu0
    %850 = vdwg.mxu0
    %v851 = vmax.f32 %v813, 0.0
    %v852 = vmax.f32 %v818, 0.0
    %v853 = vmax.f32 %v823, 0.0
    %v854 = vmax.f32 %v828, 0.0
    %v855 = vmax.f32 %v833, 0.0
    %v856 = vmax.f32 %v838, 0.0
    %v857 = vmax.f32 %v843, 0.0
    %v858 = vmax.f32 %v848, 0.0
    %v859 = vld [vmem:[%s9] sm:$0xff]
    %v860 = vld [vmem:[%s9 + $0x8] sm:$0xff]
    %v861 = vld [vmem:[%s10] sm:$0xff]
    %v862 = vld [vmem:[%s10 + $0x8] sm:$0xff]
    %864 = vset.pattern.permute.xlu0 0
    %865 = vperm.xlu0 %864, %v861
    %v866 = vpop.permute.xlu0 %865
    %869 = vset.pattern.permute.xlu0 0
    %870 = vperm.xlu0 %869, %v862
    %v871 = vpop.permute.xlu0 %870
    %v874 = vsel %vm313, %v859, 0
    %v877 = vsel %vm313, %v860, 0
    %879 = vmatprep.subr.mxu0 0.0
    %880 = vmatpush1.msra.mxu0 0.0
    %881 = vmatprep.subr.mxu0 0.0
    %882 = vmatpush1.msra.mxu0 0.0
    %883 = vmatprep.subr.mxu0 0.0
    %884 = vmatpush1.msra.mxu0 0.0
    %885 = vmatprep.subr.mxu0 0.0
    %886 = vmatpush1.msra.mxu0 0.0
    %887 = vmatprep.subr.mxu0 0.0
    %888 = vmatpush1.msra.mxu0 0.0
    %889 = vmatprep.subr.mxu0 0.0
    %890 = vmatpush1.msra.mxu0 0.0
    %891 = vmatprep.subr.mxu0 0.0
    %892 = vmatpush1.msra.mxu0 0.0
    %893 = vmatprep.subr.mxu0 0.0
    %894 = vmatpush1.msra.mxu0 0.0
    %895 = vmatprep.subr.mxu0 0.0
    %896 = vmatpush1.msra.mxu0 %v858
    %897 = vmatprep.subr.mxu0 0.0
    %898 = vmatpush1.msra.mxu0 %v857
    %899 = vmatprep.subr.mxu0 0.0
    %900 = vmatpush1.msra.mxu0 %v856
    %901 = vmatprep.subr.mxu0 0.0
    %902 = vmatpush1.msra.mxu0 %v855
    %903 = vmatprep.subr.mxu0 0.0
    %904 = vmatpush1.msra.mxu0 %v854
    %905 = vmatprep.subr.mxu0 0.0
    %906 = vmatpush1.msra.mxu0 %v853
    %907 = vmatprep.subr.mxu0 0.0
    %908 = vmatpush1.msra.mxu0 %v852
    %909 = vmatprep.subr.mxu0 0.0
    %910 = vmatpush1.msra.mxu0 %v851
    %911 = vmatprep.subr.mxu0 0.0
    %912 = vmatpush2.msra.mxu0 0.0
    %913 = vmatprep.subr.mxu0 0.0
    %914 = vmatpush2.msra.mxu0 0.0
    %915 = vmatprep.subr.mxu0 0.0
    %916 = vmatpush2.msra.mxu0 0.0
    %917 = vmatprep.subr.mxu0 0.0
    %918 = vmatpush2.msra.mxu0 0.0
    %919 = vmatprep.subr.mxu0 0.0
    %920 = vmatpush2.msra.mxu0 0.0
    %921 = vmatprep.subr.mxu0 0.0
    %922 = vmatpush2.msra.mxu0 0.0
    %923 = vmatprep.subr.mxu0 0.0
    %924 = vmatpush2.msra.mxu0 0.0
    %925 = vmatprep.subr.mxu0 0.0
    %926 = vmatpush2.msra.mxu0 0.0
    %927 = vmatprep.subr.mxu0 0.0
    %928 = vmatpush2.msra.mxu0 0.0
    %929 = vmatprep.subr.mxu0 0.0
    %930 = vmatpush2.msra.mxu0 0.0
    %931 = vmatprep.subr.mxu0 0.0
    %932 = vmatpush2.msra.mxu0 0.0
    %933 = vmatprep.subr.mxu0 0.0
    %934 = vmatpush2.msra.mxu0 0.0
    %935 = vmatprep.subr.mxu0 0.0
    %936 = vmatpush2.msra.mxu0 0.0
    %937 = vmatprep.subr.mxu0 0.0
    %938 = vmatpush2.msra.mxu0 0.0
    %939 = vmatprep.subr.mxu0 0.0
    %940 = vmatpush2.msra.mxu0 0.0
    %941 = vmatprep.subr.mxu0 0.0
    %942 = vmatpush2.msra.mxu0 0.0
    %943 = vmatprep.mubr.f32.mxu0 0.0
    %944 = vmatmul.mubr.f32.gmra.mxu0 %v874
    %v945 = vpop.f32.mrf.mxu0
    %v946 = vadd.f32 %v866, %v945
    %v947 = vpop.f32.mrf.mxu0
    %948 = vmatprep.mubr.f32.mxu0 0.0
    %949 = vmatmul.mubr.f32.gmra.mxu0 %v877
    %v950 = vpop.f32.mrf.mxu0
    %v951 = vadd.f32 %v871, %v950
    %v952 = vpop.f32.mrf.mxu0
    %953 = vdwg.mxu0
    %v954 = vlaneseq
    %v955 = vand.u32 %v954, 127
    %v956 = vadd.s32 %v955, 128
    %v957 = vlaneseq
    %v958 = vshrl.u32 %v957, 7
    %v959 = vmul.u32 %v958, 128
    %vm960 = vcmp.ge.s32.totalorder %v955, %v959
    %vm961 = vcmp.ge.s32.totalorder %v956, %v959
    %v962 = vadd.s32 %v959, 128
    %vm963 = vcmp.lt.s32.totalorder %v955, %v962
    %vm964 = vcmp.lt.s32.totalorder %v956, %v962
    %vm965 = vmand %vm960, %vm963
    %vm966 = vmand %vm961, %vm964
    %v967 = vsel %vm965, 1, 0
    %v968 = vsel %vm966, 1, 0
    %v969 = vcvt.s32.f32 %v967
    %v970 = vcvt.s32.f32 %v968
    %vm971 = vcmask 15360
    %v973 = vsel %vm971, %v946, 0
    %v976 = vsel %vm971, %v951, 0
    %v979 = vsel %vm149, %v969, 0
    %v982 = vsel %vm149, %v970, 0
    %984 = vmatprep.subr.mxu0 0.0
    %985 = vmatpush1.msra.mxu0 0.0
    %986 = vmatprep.subr.mxu0 0.0
    %987 = vmatpush1.msra.mxu0 0.0
    %988 = vmatprep.subr.mxu0 0.0
    %989 = vmatpush1.msra.mxu0 0.0
    %990 = vmatprep.subr.mxu0 0.0
    %991 = vmatpush1.msra.mxu0 0.0
    %992 = vmatprep.subr.mxu0 0.0
    %993 = vmatpush1.msra.mxu0 0.0
    %994 = vmatprep.subr.mxu0 0.0
    %995 = vmatpush1.msra.mxu0 0.0
    %996 = vmatprep.subr.mxu0 0.0
    %997 = vmatpush1.msra.mxu0 0.0
    %998 = vmatprep.subr.mxu0 0.0
    %999 = vmatpush1.msra.mxu0 0.0
    %1000 = vmatprep.subr.mxu0 0.0
    %1001 = vmatpush1.msra.mxu0 0.0
    %1002 = vmatprep.subr.mxu0 0.0
    %1003 = vmatpush1.msra.mxu0 0.0
    %1004 = vmatprep.subr.mxu0 0.0
    %1005 = vmatpush1.msra.mxu0 0.0
    %1006 = vmatprep.subr.mxu0 0.0
    %1007 = vmatpush1.msra.mxu0 0.0
    %1008 = vmatprep.subr.mxu0 0.0
    %1009 = vmatpush1.msra.mxu0 0.0
    %1010 = vmatprep.subr.mxu0 0.0
    %1011 = vmatpush1.msra.mxu0 0.0
    %1012 = vmatprep.subr.mxu0 0.0
    %1013 = vmatpush1.msra.mxu0 0.0
    %1014 = vmatprep.subr.mxu0 %v982
    %1015 = vmatpush1.msra.mxu0 %v979
    %1016 = vmatprep.subr.mxu0 0.0
    %1017 = vmatpush2.msra.mxu0 0.0
    %1018 = vmatprep.subr.mxu0 0.0
    %1019 = vmatpush2.msra.mxu0 0.0
    %1020 = vmatprep.subr.mxu0 0.0
    %1021 = vmatpush2.msra.mxu0 0.0
    %1022 = vmatprep.subr.mxu0 0.0
    %1023 = vmatpush2.msra.mxu0 0.0
    %1024 = vmatprep.subr.mxu0 0.0
    %1025 = vmatpush2.msra.mxu0 0.0
    %1026 = vmatprep.subr.mxu0 0.0
    %1027 = vmatpush2.msra.mxu0 0.0
    %1028 = vmatprep.subr.mxu0 0.0
    %1029 = vmatpush2.msra.mxu0 0.0
    %1030 = vmatprep.subr.mxu0 0.0
    %1031 = vmatpush2.msra.mxu0 0.0
    %1032 = vmatprep.subr.mxu0 0.0
    %1033 = vmatpush2.msra.mxu0 0.0
    %1034 = vmatprep.subr.mxu0 0.0
    %1035 = vmatpush2.msra.mxu0 0.0
    %1036 = vmatprep.subr.mxu0 0.0
    %1037 = vmatpush2.msra.mxu0 0.0
    %1038 = vmatprep.subr.mxu0 0.0
    %1039 = vmatpush2.msra.mxu0 0.0
    %1040 = vmatprep.subr.mxu0 0.0
    %1041 = vmatpush2.msra.mxu0 0.0
    %1042 = vmatprep.subr.mxu0 0.0
    %1043 = vmatpush2.msra.mxu0 0.0
    %1044 = vmatprep.subr.mxu0 0.0
    %1045 = vmatpush2.msra.mxu0 0.0
    %1046 = vmatprep.subr.mxu0 0.0
    %1047 = vmatpush2.msra.mxu0 0.0
    %1048 = vmatprep.mubr.f32.mxu0 0.0
    %1049 = vmatmul.mubr.f32.gmra.mxu0 %v973
    %v1050 = vpop.f32.mrf.mxu0
    %v1051 = vadd.f32 0.0, %v1050
    %v1052 = vpop.f32.mrf.mxu0
    %v1053 = vadd.f32 0.0, %v1052
    %1054 = vmatprep.mubr.f32.mxu0 0.0
    %1055 = vmatmul.mubr.f32.gmra.mxu0 %v976
    %v1056 = vpop.f32.mrf.mxu0
    %v1057 = vadd.f32 0.0, %v1056
    %v1058 = vpop.f32.mrf.mxu0
    %v1059 = vadd.f32 0.0, %v1058
    %1060 = vdwg.mxu0
    %v1061 = vunpack.c.l.bf16 %v66
    %v1063 = vlaneseq
    %v1064 = vshrl.u32 %v1063, 7
    %v1065 = vsub.s32 0, %v1064
    %v1066 = vrot.slane %v1061, %v1065
    %v1067 = vlaneseq
    %v1068 = vshrl.u32 %v1067, 7
    %v1069 = vsub.s32 4, %v1068
    %v1070 = vrot.slane %v1061, %v1069
    %v1073 = vlaneseq
    %v1074 = vshrl.u32 %v1073, 7
    %v1075 = vsub.s32 0, %v1074
    %v1076 = vrot.slane %v1066, %v1075
    %v1077 = vlaneseq
    %v1078 = vshrl.u32 %v1077, 7
    %v1079 = vsub.s32 0, %v1078
    %v1080 = vrot.slane %v1070, %v1079
    %v1081 = vmul.f32 %v1051, %v1076
    %v1082 = vmul.f32 %v1053, %v1080
    %v1085 = vcombine.low %v1081, %v1082
    %v1087 = vadd.f32 %v1061, %v1085
    %v1088 = vlaneseq
    %v1089 = vshrl.u32 %v1088, 7
    %v1090 = vsub.s32 1, %v1089
    %v1091 = vrot.slane %v1061, %v1090
    %v1092 = vlaneseq
    %v1093 = vshrl.u32 %v1092, 7
    %v1094 = vsub.s32 5, %v1093
    %v1095 = vrot.slane %v1061, %v1094
    %v1098 = vlaneseq
    %v1099 = vshrl.u32 %v1098, 7
    %v1100 = vsub.s32 1, %v1099
    %v1101 = vrot.slane %v1091, %v1100
    %v1102 = vlaneseq
    %v1103 = vshrl.u32 %v1102, 7
    %v1104 = vsub.s32 1, %v1103
    %v1105 = vrot.slane %v1095, %v1104
    %v1106 = vmul.f32 %v1051, %v1101
    %v1107 = vmul.f32 %v1053, %v1105
    %v1110 = vcombine.high %v1106, %v1107
    %v1112 = vadd.f32 %v1087, %v1110
    %v1113 = vlaneseq
    %v1114 = vshrl.u32 %v1113, 7
    %v1115 = vsub.s32 2, %v1114
    %v1116 = vrot.slane %v1061, %v1115
    %v1117 = vlaneseq
    %v1118 = vshrl.u32 %v1117, 7
    %v1119 = vsub.s32 6, %v1118
    %v1120 = vrot.slane %v1061, %v1119
    %v1123 = vlaneseq
    %v1124 = vshrl.u32 %v1123, 7
    %v1125 = vsub.s32 2, %v1124
    %v1126 = vrot.slane %v1116, %v1125
    %v1127 = vlaneseq
    %v1128 = vshrl.u32 %v1127, 7
    %v1129 = vsub.s32 2, %v1128
    %v1130 = vrot.slane %v1120, %v1129
    %v1131 = vmul.f32 %v1057, %v1126
    %v1132 = vmul.f32 %v1059, %v1130
    %v1135 = vcombine.low %v1131, %v1132
    %v1137 = vadd.f32 %v1112, %v1135
    %v1138 = vlaneseq
    %v1139 = vshrl.u32 %v1138, 7
    %v1140 = vsub.s32 3, %v1139
    %v1141 = vrot.slane %v1061, %v1140
    %v1142 = vlaneseq
    %v1143 = vshrl.u32 %v1142, 7
    %v1144 = vsub.s32 7, %v1143
    %v1145 = vrot.slane %v1061, %v1144
    %v1148 = vlaneseq
    %v1149 = vshrl.u32 %v1148, 7
    %v1150 = vsub.s32 3, %v1149
    %v1151 = vrot.slane %v1141, %v1150
    %v1152 = vlaneseq
    %v1153 = vshrl.u32 %v1152, 7
    %v1154 = vsub.s32 3, %v1153
    %v1155 = vrot.slane %v1145, %v1154
    %v1156 = vmul.f32 %v1057, %v1151
    %v1157 = vmul.f32 %v1059, %v1155
    %v1160 = vcombine.high %v1156, %v1157
    %v1162 = vadd.f32 %v1137, %v1160
    %v1163 = vld [vmem:[%s11] sm:$0xff]
    %v1164 = vld [vmem:[%s11 + $0x8] sm:$0xff]
    %v1165 = vld [vmem:[%s11 + $0x10] sm:$0xff]
    %v1166 = vld [vmem:[%s11 + $0x18] sm:$0xff]
    %v1167 = vld [vmem:[%s11 + $0x20] sm:$0xff]
    %v1168 = vld [vmem:[%s11 + $0x28] sm:$0xff]
    %v1169 = vld [vmem:[%s11 + $0x30] sm:$0xff]
    %v1170 = vld [vmem:[%s11 + $0x38] sm:$0xff]
    %v1171 = vpack.c.bf16 %v1164, %v1163
    %v1172 = vpack.c.bf16 %v1166, %v1165
    %v1173 = vpack.c.bf16 %v1168, %v1167
    %v1174 = vpack.c.bf16 %v1170, %v1169
    %v1176 = vcombine.high %v1162, %v1162
    %v1178 = vpack.c.bf16 %v1162, %v1162
    %v1179 = vpack.c.bf16 %v1176, %v1176
    %v1180 = vld [vmem:[%s12] sm:$0xff]
    %v1181 = vld [vmem:[%s12 + $0x8] sm:$0xff]
    %v1182 = vld [vmem:[%s12 + $0x10] sm:$0xff]
    %v1183 = vld [vmem:[%s12 + $0x18] sm:$0xff]
    %v1184 = vld [vmem:[%s12 + $0x20] sm:$0xff]
    %v1185 = vld [vmem:[%s12 + $0x28] sm:$0xff]
    %v1186 = vld [vmem:[%s12 + $0x30] sm:$0xff]
    %v1187 = vld [vmem:[%s12 + $0x38] sm:$0xff]
    %1189 = vset.pattern.permute.xlu0 0
    %1190 = vperm.xlu0 %1189, %v1180
    %v1191 = vpop.permute.xlu0 %1190
    %1194 = vset.pattern.permute.xlu0 0
    %1195 = vperm.xlu0 %1194, %v1181
    %v1196 = vpop.permute.xlu0 %1195
    %1199 = vset.pattern.permute.xlu0 0
    %1200 = vperm.xlu0 %1199, %v1182
    %v1201 = vpop.permute.xlu0 %1200
    %1204 = vset.pattern.permute.xlu0 0
    %1205 = vperm.xlu0 %1204, %v1183
    %v1206 = vpop.permute.xlu0 %1205
    %1209 = vset.pattern.permute.xlu0 0
    %1210 = vperm.xlu0 %1209, %v1184
    %v1211 = vpop.permute.xlu0 %1210
    %1214 = vset.pattern.permute.xlu0 0
    %1215 = vperm.xlu0 %1214, %v1185
    %v1216 = vpop.permute.xlu0 %1215
    %1219 = vset.pattern.permute.xlu0 0
    %1220 = vperm.xlu0 %1219, %v1186
    %v1221 = vpop.permute.xlu0 %1220
    %1224 = vset.pattern.permute.xlu0 0
    %1225 = vperm.xlu0 %1224, %v1187
    %v1226 = vpop.permute.xlu0 %1225
    %v1229 = vsel %vm136, %v1171, 0
    %v1232 = vsel %vm136, %v1172, 0
    %v1235 = vsel %vm136, %v1173, 0
    %v1238 = vsel %vm136, %v1174, 0
    %v1241 = vsel %vm149, %v1178, 0
    %v1244 = vsel %vm149, %v1179, 0
    %1246 = vmatprep.subr.bf16.mxu0 0
    %1247 = vmatpush1.bf16.msra.mxu0 0
    %1248 = vmatprep.subr.bf16.mxu0 0
    %1249 = vmatpush1.bf16.msra.mxu0 0
    %1250 = vmatprep.subr.bf16.mxu0 0
    %1251 = vmatpush1.bf16.msra.mxu0 0
    %1252 = vmatprep.subr.bf16.mxu0 0
    %1253 = vmatpush1.bf16.msra.mxu0 0
    %1254 = vmatprep.subr.bf16.mxu0 0
    %1255 = vmatpush1.bf16.msra.mxu0 0
    %1256 = vmatprep.subr.bf16.mxu0 0
    %1257 = vmatpush1.bf16.msra.mxu0 0
    %1258 = vmatprep.subr.bf16.mxu0 0
    %1259 = vmatpush1.bf16.msra.mxu0 0
    %1260 = vmatprep.subr.bf16.mxu0 %v1244
    %1261 = vmatpush1.bf16.msra.mxu0 %v1241
    %1262 = vmatprep.subr.bf16.mxu0 0
    %1263 = vmatpush2.bf16.msra.mxu0 0
    %1264 = vmatprep.subr.bf16.mxu0 0
    %1265 = vmatpush2.bf16.msra.mxu0 0
    %1266 = vmatprep.subr.bf16.mxu0 0
    %1267 = vmatpush2.bf16.msra.mxu0 0
    %1268 = vmatprep.subr.bf16.mxu0 0
    %1269 = vmatpush2.bf16.msra.mxu0 0
    %1270 = vmatprep.subr.bf16.mxu0 0
    %1271 = vmatpush2.bf16.msra.mxu0 0
    %1272 = vmatprep.subr.bf16.mxu0 0
    %1273 = vmatpush2.bf16.msra.mxu0 0
    %1274 = vmatprep.subr.bf16.mxu0 0
    %1275 = vmatpush2.bf16.msra.mxu0 0
    %1276 = vmatprep.subr.bf16.mxu0 0
    %1277 = vmatpush2.bf16.msra.mxu0 0
    %1278 = vmatprep.mubr.bf16.mxu0 0
    %1279 = vmatmul.mubr.bf16.gmra.mxu0 %v1229
    %v1280 = vpop.f32.mrf.mxu0
    %v1281 = vadd.f32 %v1191, %v1280
    %v1282 = vpop.f32.mrf.mxu0
    %v1283 = vadd.f32 %v1191, %v1282
    %v1284 = vpop.f32.mrf.mxu0
    %v1285 = vadd.f32 %v1196, %v1284
    %v1286 = vpop.f32.mrf.mxu0
    %v1287 = vadd.f32 %v1196, %v1286
    %1288 = vmatprep.mubr.bf16.mxu0 0
    %1289 = vmatmul.mubr.bf16.gmra.mxu0 %v1232
    %v1290 = vpop.f32.mrf.mxu0
    %v1291 = vadd.f32 %v1201, %v1290
    %v1292 = vpop.f32.mrf.mxu0
    %v1293 = vadd.f32 %v1201, %v1292
    %v1294 = vpop.f32.mrf.mxu0
    %v1295 = vadd.f32 %v1206, %v1294
    %v1296 = vpop.f32.mrf.mxu0
    %v1297 = vadd.f32 %v1206, %v1296
    %1298 = vmatprep.mubr.bf16.mxu0 0
    %1299 = vmatmul.mubr.bf16.gmra.mxu0 %v1235
    %v1300 = vpop.f32.mrf.mxu0
    %v1301 = vadd.f32 %v1211, %v1300
    %v1302 = vpop.f32.mrf.mxu0
    %v1303 = vadd.f32 %v1211, %v1302
    %v1304 = vpop.f32.mrf.mxu0
    %v1305 = vadd.f32 %v1216, %v1304
    %v1306 = vpop.f32.mrf.mxu0
    %v1307 = vadd.f32 %v1216, %v1306
    %1308 = vmatprep.mubr.bf16.mxu0 0
    %1309 = vmatmul.mubr.bf16.gmra.mxu0 %v1238
    %v1310 = vpop.f32.mrf.mxu0
    %v1311 = vadd.f32 %v1221, %v1310
    %v1312 = vpop.f32.mrf.mxu0
    %v1313 = vadd.f32 %v1221, %v1312
    %v1314 = vpop.f32.mrf.mxu0
    %v1315 = vadd.f32 %v1226, %v1314
    %v1316 = vpop.f32.mrf.mxu0
    %v1317 = vadd.f32 %v1226, %v1316
    %1318 = vdwg.mxu0
    %v1319 = vmax.f32 %v1281, 0.0
    %v1320 = vmax.f32 %v1283, 0.0
    %v1321 = vmax.f32 %v1285, 0.0
    %v1322 = vmax.f32 %v1287, 0.0
    %v1323 = vmax.f32 %v1291, 0.0
    %v1324 = vmax.f32 %v1293, 0.0
    %v1325 = vmax.f32 %v1295, 0.0
    %v1326 = vmax.f32 %v1297, 0.0
    %v1327 = vmax.f32 %v1301, 0.0
    %v1328 = vmax.f32 %v1303, 0.0
    %v1329 = vmax.f32 %v1305, 0.0
    %v1330 = vmax.f32 %v1307, 0.0
    %v1331 = vmax.f32 %v1311, 0.0
    %v1332 = vmax.f32 %v1313, 0.0
    %v1333 = vmax.f32 %v1315, 0.0
    %v1334 = vmax.f32 %v1317, 0.0
    %v1335 = vld [vmem:[%s13] sm:$0xff]
    %v1336 = vld [vmem:[%s13 + $0x8] sm:$0xff]
    %v1337 = vld [vmem:[%s13 + $0x10] sm:$0xff]
    %v1338 = vld [vmem:[%s13 + $0x18] sm:$0xff]
    %v1339 = vld [vmem:[%s13 + $0x20] sm:$0xff]
    %v1340 = vld [vmem:[%s13 + $0x28] sm:$0xff]
    %v1341 = vld [vmem:[%s13 + $0x30] sm:$0xff]
    %v1342 = vld [vmem:[%s13 + $0x38] sm:$0xff]
    %v1343 = vpack.c.bf16 %v1336, %v1335
    %v1344 = vpack.c.bf16 %v1338, %v1337
    %v1345 = vpack.c.bf16 %v1340, %v1339
    %v1346 = vpack.c.bf16 %v1342, %v1341
    %v1347 = vpack.c.bf16 %v1321, %v1319
    %v1348 = vpack.c.bf16 %v1322, %v1320
    %v1349 = vpack.c.bf16 %v1325, %v1323
    %v1350 = vpack.c.bf16 %v1326, %v1324
    %v1351 = vpack.c.bf16 %v1329, %v1327
    %v1352 = vpack.c.bf16 %v1330, %v1328
    %v1353 = vpack.c.bf16 %v1333, %v1331
    %v1354 = vpack.c.bf16 %v1334, %v1332
    %v1355 = vld [vmem:[%s14] sm:$0xff]
    %v1356 = vld [vmem:[%s14 + $0x8] sm:$0xff]
    %v1357 = vld [vmem:[%s14 + $0x10] sm:$0xff]
    %v1358 = vld [vmem:[%s14 + $0x18] sm:$0xff]
    %v1359 = vld [vmem:[%s14 + $0x20] sm:$0xff]
    %v1360 = vld [vmem:[%s14 + $0x28] sm:$0xff]
    %v1361 = vld [vmem:[%s14 + $0x30] sm:$0xff]
    %v1362 = vld [vmem:[%s14 + $0x38] sm:$0xff]
    %1364 = vset.pattern.permute.xlu0 0
    %1365 = vperm.xlu0 %1364, %v1355
    %v1366 = vpop.permute.xlu0 %1365
    %1369 = vset.pattern.permute.xlu0 0
    %1370 = vperm.xlu0 %1369, %v1356
    %v1371 = vpop.permute.xlu0 %1370
    %1374 = vset.pattern.permute.xlu0 0
    %1375 = vperm.xlu0 %1374, %v1357
    %v1376 = vpop.permute.xlu0 %1375
    %1379 = vset.pattern.permute.xlu0 0
    %1380 = vperm.xlu0 %1379, %v1358
    %v1381 = vpop.permute.xlu0 %1380
    %1384 = vset.pattern.permute.xlu0 0
    %1385 = vperm.xlu0 %1384, %v1359
    %v1386 = vpop.permute.xlu0 %1385
    %1389 = vset.pattern.permute.xlu0 0
    %1390 = vperm.xlu0 %1389, %v1360
    %v1391 = vpop.permute.xlu0 %1390
    %1394 = vset.pattern.permute.xlu0 0
    %1395 = vperm.xlu0 %1394, %v1361
    %v1396 = vpop.permute.xlu0 %1395
    %1399 = vset.pattern.permute.xlu0 0
    %1400 = vperm.xlu0 %1399, %v1362
    %v1401 = vpop.permute.xlu0 %1400
    %v1404 = vsel %vm313, %v1343, 0
    %v1407 = vsel %vm313, %v1344, 0
    %v1410 = vsel %vm313, %v1345, 0
    %v1413 = vsel %vm313, %v1346, 0
    %1415 = vmatprep.subr.bf16.mxu0 0
    %1416 = vmatpush1.bf16.msra.mxu0 0
    %1417 = vmatprep.subr.bf16.mxu0 0
    %1418 = vmatpush1.bf16.msra.mxu0 0
    %1419 = vmatprep.subr.bf16.mxu0 0
    %1420 = vmatpush1.bf16.msra.mxu0 0
    %1421 = vmatprep.subr.bf16.mxu0 0
    %1422 = vmatpush1.bf16.msra.mxu0 0
    %1423 = vmatprep.subr.bf16.mxu0 %v1354
    %1424 = vmatpush1.bf16.msra.mxu0 %v1353
    %1425 = vmatprep.subr.bf16.mxu0 %v1352
    %1426 = vmatpush1.bf16.msra.mxu0 %v1351
    %1427 = vmatprep.subr.bf16.mxu0 %v1350
    %1428 = vmatpush1.bf16.msra.mxu0 %v1349
    %1429 = vmatprep.subr.bf16.mxu0 %v1348
    %1430 = vmatpush1.bf16.msra.mxu0 %v1347
    %1431 = vmatprep.subr.bf16.mxu0 0
    %1432 = vmatpush2.bf16.msra.mxu0 0
    %1433 = vmatprep.subr.bf16.mxu0 0
    %1434 = vmatpush2.bf16.msra.mxu0 0
    %1435 = vmatprep.subr.bf16.mxu0 0
    %1436 = vmatpush2.bf16.msra.mxu0 0
    %1437 = vmatprep.subr.bf16.mxu0 0
    %1438 = vmatpush2.bf16.msra.mxu0 0
    %1439 = vmatprep.subr.bf16.mxu0 0
    %1440 = vmatpush2.bf16.msra.mxu0 0
    %1441 = vmatprep.subr.bf16.mxu0 0
    %1442 = vmatpush2.bf16.msra.mxu0 0
    %1443 = vmatprep.subr.bf16.mxu0 0
    %1444 = vmatpush2.bf16.msra.mxu0 0
    %1445 = vmatprep.subr.bf16.mxu0 0
    %1446 = vmatpush2.bf16.msra.mxu0 0
    %1447 = vmatprep.mubr.bf16.mxu0 0
    %1448 = vmatmul.mubr.bf16.gmra.mxu0 %v1404
    %v1449 = vpop.f32.mrf.mxu0
    %v1450 = vadd.f32 %v1366, %v1449
    %v1451 = vpop.f32.mrf.mxu0
    %v1452 = vadd.f32 %v1366, %v1451
    %v1453 = vpop.f32.mrf.mxu0
    %v1454 = vadd.f32 %v1371, %v1453
    %v1455 = vpop.f32.mrf.mxu0
    %v1456 = vadd.f32 %v1371, %v1455
    %1457 = vmatprep.mubr.bf16.mxu0 0
    %1458 = vmatmul.mubr.bf16.gmra.mxu0 %v1407
    %v1459 = vpop.f32.mrf.mxu0
    %v1460 = vadd.f32 %v1376, %v1459
    %v1461 = vpop.f32.mrf.mxu0
    %v1462 = vadd.f32 %v1376, %v1461
    %v1463 = vpop.f32.mrf.mxu0
    %v1464 = vadd.f32 %v1381, %v1463
    %v1465 = vpop.f32.mrf.mxu0
    %v1466 = vadd.f32 %v1381, %v1465
    %1467 = vmatprep.mubr.bf16.mxu0 0
    %1468 = vmatmul.mubr.bf16.gmra.mxu0 %v1410
    %v1469 = vpop.f32.mrf.mxu0
    %v1470 = vadd.f32 %v1386, %v1469
    %v1471 = vpop.f32.mrf.mxu0
    %v1472 = vadd.f32 %v1386, %v1471
    %v1473 = vpop.f32.mrf.mxu0
    %v1474 = vadd.f32 %v1391, %v1473
    %v1475 = vpop.f32.mrf.mxu0
    %v1476 = vadd.f32 %v1391, %v1475
    %1477 = vmatprep.mubr.bf16.mxu0 0
    %1478 = vmatmul.mubr.bf16.gmra.mxu0 %v1413
    %v1479 = vpop.f32.mrf.mxu0
    %v1480 = vadd.f32 %v1396, %v1479
    %v1481 = vpop.f32.mrf.mxu0
    %v1482 = vadd.f32 %v1396, %v1481
    %v1483 = vpop.f32.mrf.mxu0
    %v1484 = vadd.f32 %v1401, %v1483
    %v1485 = vpop.f32.mrf.mxu0
    %v1486 = vadd.f32 %v1401, %v1485
    %1487 = vdwg.mxu0
    %v1488 = vmax.f32 %v1450, 0.0
    %v1489 = vmax.f32 %v1452, 0.0
    %v1490 = vmax.f32 %v1454, 0.0
    %v1491 = vmax.f32 %v1456, 0.0
    %v1492 = vmax.f32 %v1460, 0.0
    %v1493 = vmax.f32 %v1462, 0.0
    %v1494 = vmax.f32 %v1464, 0.0
    %v1495 = vmax.f32 %v1466, 0.0
    %v1496 = vmax.f32 %v1470, 0.0
    %v1497 = vmax.f32 %v1472, 0.0
    %v1498 = vmax.f32 %v1474, 0.0
    %v1499 = vmax.f32 %v1476, 0.0
    %v1500 = vmax.f32 %v1480, 0.0
    %v1501 = vmax.f32 %v1482, 0.0
    %v1502 = vmax.f32 %v1484, 0.0
    %v1503 = vmax.f32 %v1486, 0.0
    %1504 = vmax.xlane.f32.xlu0 %v1488
    %v1505 = vpop.xlane.xlu0 %1504
    %1506 = vmax.xlane.f32.xlu0 %v1490
    %v1507 = vpop.xlane.xlu0 %1506
    %1508 = vmax.xlane.f32.xlu0 %v1492
    %v1509 = vpop.xlane.xlu0 %1508
    %1510 = vmax.xlane.f32.xlu0 %v1494
    %v1511 = vpop.xlane.xlu0 %1510
    %1512 = vmax.xlane.f32.xlu0 %v1496
    %v1513 = vpop.xlane.xlu0 %1512
    %1514 = vmax.xlane.f32.xlu0 %v1498
    %v1515 = vpop.xlane.xlu0 %1514
    %1516 = vmax.xlane.f32.xlu0 %v1500
    %v1517 = vpop.xlane.xlu0 %1516
    %1518 = vmax.xlane.f32.xlu0 %v1502
    %v1519 = vpop.xlane.xlu0 %1518
    %1520 = vst.msk [vmem:[#allocation3] sm:$0xff] %vm431, %v1505
    %1521 = vst.msk [vmem:[#allocation3 + $0x8] sm:$0xff] %vm431, %v1507
    %1522 = vst.msk [vmem:[#allocation3 + $0x10] sm:$0xff] %vm431, %v1509
    %1523 = vst.msk [vmem:[#allocation3 + $0x18] sm:$0xff] %vm431, %v1511
    %1524 = vst.msk [vmem:[#allocation3 + $0x20] sm:$0xff] %vm431, %v1513
    %1525 = vst.msk [vmem:[#allocation3 + $0x28] sm:$0xff] %vm431, %v1515
    %1526 = vst.msk [vmem:[#allocation3 + $0x30] sm:$0xff] %vm431, %v1517
    %1527 = vst.msk [vmem:[#allocation3 + $0x38] sm:$0xff] %vm431, %v1519
    %1528 = vmax.xlane.f32.xlu0 %v1489
    %v1529 = vpop.xlane.xlu0 %1528
    %1530 = vmax.xlane.f32.xlu0 %v1491
    %v1531 = vpop.xlane.xlu0 %1530
    %1532 = vmax.xlane.f32.xlu0 %v1493
    %v1533 = vpop.xlane.xlu0 %1532
    %1534 = vmax.xlane.f32.xlu0 %v1495
    %v1535 = vpop.xlane.xlu0 %1534
    %1536 = vmax.xlane.f32.xlu0 %v1497
    %v1537 = vpop.xlane.xlu0 %1536
    %1538 = vmax.xlane.f32.xlu0 %v1499
    %v1539 = vpop.xlane.xlu0 %1538
    %1540 = vmax.xlane.f32.xlu0 %v1501
    %v1541 = vpop.xlane.xlu0 %1540
    %1542 = vmax.xlane.f32.xlu0 %v1503
    %v1543 = vpop.xlane.xlu0 %1542
    %1544 = vst.msk [vmem:[#allocation3] sm:$0xff] %vm456, %v1529
    %1545 = vst.msk [vmem:[#allocation3 + $0x8] sm:$0xff] %vm456, %v1531
    %1546 = vst.msk [vmem:[#allocation3 + $0x10] sm:$0xff] %vm456, %v1533
    %1547 = vst.msk [vmem:[#allocation3 + $0x18] sm:$0xff] %vm456, %v1535
    %1548 = vst.msk [vmem:[#allocation3 + $0x20] sm:$0xff] %vm456, %v1537
    %1549 = vst.msk [vmem:[#allocation3 + $0x28] sm:$0xff] %vm456, %v1539
    %1550 = vst.msk [vmem:[#allocation3 + $0x30] sm:$0xff] %vm456, %v1541
    %1551 = vst.msk [vmem:[#allocation3 + $0x38] sm:$0xff] %vm456, %v1543
    %v1552 = vld [vmem:[%s15] sm:$0xff]
    %v1553 = vld [vmem:[%s15 + $0x8] sm:$0xff]
    %v1554 = vld [vmem:[%s15 + $0x10] sm:$0xff]
    %v1555 = vld [vmem:[%s15 + $0x18] sm:$0xff]
    %v1556 = vld [vmem:[%s15 + $0x20] sm:$0xff]
    %v1557 = vld [vmem:[%s15 + $0x28] sm:$0xff]
    %v1558 = vld [vmem:[%s15 + $0x30] sm:$0xff]
    %v1559 = vld [vmem:[%s15 + $0x38] sm:$0xff]
    %v1560 = vld [vmem:[#allocation3] sm:$0xff]
    %v1561 = vld [vmem:[#allocation3 + $0x8] sm:$0xff]
    %v1562 = vld [vmem:[#allocation3 + $0x10] sm:$0xff]
    %v1563 = vld [vmem:[#allocation3 + $0x18] sm:$0xff]
    %v1564 = vld [vmem:[#allocation3 + $0x20] sm:$0xff]
    %v1565 = vld [vmem:[#allocation3 + $0x28] sm:$0xff]
    %v1566 = vld [vmem:[#allocation3 + $0x30] sm:$0xff]
    %v1567 = vld [vmem:[#allocation3 + $0x38] sm:$0xff]
    %v1568 = vld [vmem:[%s16] sm:$0xff]
    %v1569 = vld [vmem:[%s16 + $0x8] sm:$0xff]
    %v1570 = vld [vmem:[%s16 + $0x10] sm:$0xff]
    %v1571 = vld [vmem:[%s16 + $0x18] sm:$0xff]
    %v1572 = vld [vmem:[%s16 + $0x20] sm:$0xff]
    %v1573 = vld [vmem:[%s16 + $0x28] sm:$0xff]
    %v1574 = vld [vmem:[%s16 + $0x30] sm:$0xff]
    %v1575 = vld [vmem:[%s16 + $0x38] sm:$0xff]
    %1577 = vset.pattern.permute.xlu0 0
    %1578 = vperm.xlu0 %1577, %v1568
    %v1579 = vpop.permute.xlu0 %1578
    %1582 = vset.pattern.permute.xlu0 0
    %1583 = vperm.xlu0 %1582, %v1569
    %v1584 = vpop.permute.xlu0 %1583
    %1587 = vset.pattern.permute.xlu0 0
    %1588 = vperm.xlu0 %1587, %v1570
    %v1589 = vpop.permute.xlu0 %1588
    %1592 = vset.pattern.permute.xlu0 0
    %1593 = vperm.xlu0 %1592, %v1571
    %v1594 = vpop.permute.xlu0 %1593
    %1597 = vset.pattern.permute.xlu0 0
    %1598 = vperm.xlu0 %1597, %v1572
    %v1599 = vpop.permute.xlu0 %1598
    %1602 = vset.pattern.permute.xlu0 0
    %1603 = vperm.xlu0 %1602, %v1573
    %v1604 = vpop.permute.xlu0 %1603
    %1607 = vset.pattern.permute.xlu0 0
    %1608 = vperm.xlu0 %1607, %v1574
    %v1609 = vpop.permute.xlu0 %1608
    %1612 = vset.pattern.permute.xlu0 0
    %1613 = vperm.xlu0 %1612, %v1575
    %v1614 = vpop.permute.xlu0 %1613
    %v1617 = vsel %vm313, %v1552, 0
    %v1620 = vsel %vm313, %v1553, 0
    %v1623 = vsel %vm313, %v1554, 0
    %v1626 = vsel %vm313, %v1555, 0
    %v1629 = vsel %vm313, %v1556, 0
    %v1632 = vsel %vm313, %v1557, 0
    %v1635 = vsel %vm313, %v1558, 0
    %v1638 = vsel %vm313, %v1559, 0
    %1640 = vmatprep.subr.mxu0 0.0
    %1641 = vmatpush1.msra.mxu0 0.0
    %1642 = vmatprep.subr.mxu0 0.0
    %1643 = vmatpush1.msra.mxu0 0.0
    %1644 = vmatprep.subr.mxu0 0.0
    %1645 = vmatpush1.msra.mxu0 0.0
    %1646 = vmatprep.subr.mxu0 0.0
    %1647 = vmatpush1.msra.mxu0 0.0
    %1648 = vmatprep.subr.mxu0 0.0
    %1649 = vmatpush1.msra.mxu0 0.0
    %1650 = vmatprep.subr.mxu0 0.0
    %1651 = vmatpush1.msra.mxu0 0.0
    %1652 = vmatprep.subr.mxu0 0.0
    %1653 = vmatpush1.msra.mxu0 0.0
    %1654 = vmatprep.subr.mxu0 0.0
    %1655 = vmatpush1.msra.mxu0 0.0
    %1656 = vmatprep.subr.mxu0 0.0
    %1657 = vmatpush1.msra.mxu0 %v1567
    %1658 = vmatprep.subr.mxu0 0.0
    %1659 = vmatpush1.msra.mxu0 %v1566
    %1660 = vmatprep.subr.mxu0 0.0
    %1661 = vmatpush1.msra.mxu0 %v1565
    %1662 = vmatprep.subr.mxu0 0.0
    %1663 = vmatpush1.msra.mxu0 %v1564
    %1664 = vmatprep.subr.mxu0 0.0
    %1665 = vmatpush1.msra.mxu0 %v1563
    %1666 = vmatprep.subr.mxu0 0.0
    %1667 = vmatpush1.msra.mxu0 %v1562
    %1668 = vmatprep.subr.mxu0 0.0
    %1669 = vmatpush1.msra.mxu0 %v1561
    %1670 = vmatprep.subr.mxu0 0.0
    %1671 = vmatpush1.msra.mxu0 %v1560
    %1672 = vmatprep.subr.mxu0 0.0
    %1673 = vmatpush2.msra.mxu0 0.0
    %1674 = vmatprep.subr.mxu0 0.0
    %1675 = vmatpush2.msra.mxu0 0.0
    %1676 = vmatprep.subr.mxu0 0.0
    %1677 = vmatpush2.msra.mxu0 0.0
    %1678 = vmatprep.subr.mxu0 0.0
    %1679 = vmatpush2.msra.mxu0 0.0
    %1680 = vmatprep.subr.mxu0 0.0
    %1681 = vmatpush2.msra.mxu0 0.0
    %1682 = vmatprep.subr.mxu0 0.0
    %1683 = vmatpush2.msra.mxu0 0.0
    %1684 = vmatprep.subr.mxu0 0.0
    %1685 = vmatpush2.msra.mxu0 0.0
    %1686 = vmatprep.subr.mxu0 0.0
    %1687 = vmatpush2.msra.mxu0 0.0
    %1688 = vmatprep.subr.mxu0 0.0
    %1689 = vmatpush2.msra.mxu0 0.0
    %1690 = vmatprep.subr.mxu0 0.0
    %1691 = vmatpush2.msra.mxu0 0.0
    %1692 = vmatprep.subr.mxu0 0.0
    %1693 = vmatpush2.msra.mxu0 0.0
    %1694 = vmatprep.subr.mxu0 0.0
    %1695 = vmatpush2.msra.mxu0 0.0
    %1696 = vmatprep.subr.mxu0 0.0
    %1697 = vmatpush2.msra.mxu0 0.0
    %1698 = vmatprep.subr.mxu0 0.0
    %1699 = vmatpush2.msra.mxu0 0.0
    %1700 = vmatprep.subr.mxu0 0.0
    %1701 = vmatpush2.msra.mxu0 0.0
    %1702 = vmatprep.subr.mxu0 0.0
    %1703 = vmatpush2.msra.mxu0 0.0
    %1704 = vmatprep.mubr.f32.mxu0 0.0
    %1705 = vmatmul.mubr.f32.gmra.mxu0 %v1617
    %v1706 = vpop.f32.mrf.mxu0
    %v1707 = vadd.f32 %v1579, %v1706
    %v1708 = vpop.f32.mrf.mxu0
    %1709 = vmatprep.mubr.f32.mxu0 0.0
    %1710 = vmatmul.mubr.f32.gmra.mxu0 %v1620
    %v1711 = vpop.f32.mrf.mxu0
    %v1712 = vadd.f32 %v1584, %v1711
    %v1713 = vpop.f32.mrf.mxu0
    %1714 = vmatprep.mubr.f32.mxu0 0.0
    %1715 = vmatmul.mubr.f32.gmra.mxu0 %v1623
    %v1716 = vpop.f32.mrf.mxu0
    %v1717 = vadd.f32 %v1589, %v1716
    %v1718 = vpop.f32.mrf.mxu0
    %1719 = vmatprep.mubr.f32.mxu0 0.0
    %1720 = vmatmul.mubr.f32.gmra.mxu0 %v1626
    %v1721 = vpop.f32.mrf.mxu0
    %v1722 = vadd.f32 %v1594, %v1721
    %v1723 = vpop.f32.mrf.mxu0
    %1724 = vmatprep.mubr.f32.mxu0 0.0
    %1725 = vmatmul.mubr.f32.gmra.mxu0 %v1629
    %v1726 = vpop.f32.mrf.mxu0
    %v1727 = vadd.f32 %v1599, %v1726
    %v1728 = vpop.f32.mrf.mxu0
    %1729 = vmatprep.mubr.f32.mxu0 0.0
    %1730 = vmatmul.mubr.f32.gmra.mxu0 %v1632
    %v1731 = vpop.f32.mrf.mxu0
    %v1732 = vadd.f32 %v1604, %v1731
    %v1733 = vpop.f32.mrf.mxu0
    %1734 = vmatprep.mubr.f32.mxu0 0.0
    %1735 = vmatmul.mubr.f32.gmra.mxu0 %v1635
    %v1736 = vpop.f32.mrf.mxu0
    %v1737 = vadd.f32 %v1609, %v1736
    %v1738 = vpop.f32.mrf.mxu0
    %1739 = vmatprep.mubr.f32.mxu0 0.0
    %1740 = vmatmul.mubr.f32.gmra.mxu0 %v1638
    %v1741 = vpop.f32.mrf.mxu0
    %v1742 = vadd.f32 %v1614, %v1741
    %v1743 = vpop.f32.mrf.mxu0
    %1744 = vdwg.mxu0
    %v1745 = vmax.f32 %v1707, 0.0
    %v1746 = vmax.f32 %v1712, 0.0
    %v1747 = vmax.f32 %v1717, 0.0
    %v1748 = vmax.f32 %v1722, 0.0
    %v1749 = vmax.f32 %v1727, 0.0
    %v1750 = vmax.f32 %v1732, 0.0
    %v1751 = vmax.f32 %v1737, 0.0
    %v1752 = vmax.f32 %v1742, 0.0
    %v1753 = vld [vmem:[%s17] sm:$0x1]
    %v1754 = vld [vmem:[#allocation4] sm:$0x1]
    %1756 = vset.pattern.permute.xlu0 0
    %1757 = vperm.xlu0 %1756, %v1754
    %v1758 = vpop.permute.xlu0 %1757
    %v1760 = vlaneseq
    %v1761 = vshrl.u32 %v1760, 7
    %v1762 = vsub.s32 0, %v1761
    %v1763 = vrot.slane %v1758, %v1762
    %v1765 = vsel %vm313, %v1753, 0
    %1767 = vmatprep.subr.mxu0 0.0
    %1768 = vmatpush1.msra.mxu0 0.0
    %1769 = vmatprep.subr.mxu0 0.0
    %1770 = vmatpush1.msra.mxu0 0.0
    %1771 = vmatprep.subr.mxu0 0.0
    %1772 = vmatpush1.msra.mxu0 0.0
    %1773 = vmatprep.subr.mxu0 0.0
    %1774 = vmatpush1.msra.mxu0 0.0
    %1775 = vmatprep.subr.mxu0 0.0
    %1776 = vmatpush1.msra.mxu0 0.0
    %1777 = vmatprep.subr.mxu0 0.0
    %1778 = vmatpush1.msra.mxu0 0.0
    %1779 = vmatprep.subr.mxu0 0.0
    %1780 = vmatpush1.msra.mxu0 0.0
    %1781 = vmatprep.subr.mxu0 0.0
    %1782 = vmatpush1.msra.mxu0 0.0
    %1783 = vmatprep.subr.mxu0 0.0
    %1784 = vmatpush1.msra.mxu0 %v1752
    %1785 = vmatprep.subr.mxu0 0.0
    %1786 = vmatpush1.msra.mxu0 %v1751
    %1787 = vmatprep.subr.mxu0 0.0
    %1788 = vmatpush1.msra.mxu0 %v1750
    %1789 = vmatprep.subr.mxu0 0.0
    %1790 = vmatpush1.msra.mxu0 %v1749
    %1791 = vmatprep.subr.mxu0 0.0
    %1792 = vmatpush1.msra.mxu0 %v1748
    %1793 = vmatprep.subr.mxu0 0.0
    %1794 = vmatpush1.msra.mxu0 %v1747
    %1795 = vmatprep.subr.mxu0 0.0
    %1796 = vmatpush1.msra.mxu0 %v1746
    %1797 = vmatprep.subr.mxu0 0.0
    %1798 = vmatpush1.msra.mxu0 %v1745
    %1799 = vmatprep.subr.mxu0 0.0
    %1800 = vmatpush2.msra.mxu0 0.0
    %1801 = vmatprep.subr.mxu0 0.0
    %1802 = vmatpush2.msra.mxu0 0.0
    %1803 = vmatprep.subr.mxu0 0.0
    %1804 = vmatpush2.msra.mxu0 0.0
    %1805 = vmatprep.subr.mxu0 0.0
    %1806 = vmatpush2.msra.mxu0 0.0
    %1807 = vmatprep.subr.mxu0 0.0
    %1808 = vmatpush2.msra.mxu0 0.0
    %1809 = vmatprep.subr.mxu0 0.0
    %1810 = vmatpush2.msra.mxu0 0.0
    %1811 = vmatprep.subr.mxu0 0.0
    %1812 = vmatpush2.msra.mxu0 0.0
    %1813 = vmatprep.subr.mxu0 0.0
    %1814 = vmatpush2.msra.mxu0 0.0
    %1815 = vmatprep.subr.mxu0 0.0
    %1816 = vmatpush2.msra.mxu0 0.0
    %1817 = vmatprep.subr.mxu0 0.0
    %1818 = vmatpush2.msra.mxu0 0.0
    %1819 = vmatprep.subr.mxu0 0.0
    %1820 = vmatpush2.msra.mxu0 0.0
    %1821 = vmatprep.subr.mxu0 0.0
    %1822 = vmatpush2.msra.mxu0 0.0
    %1823 = vmatprep.subr.mxu0 0.0
    %1824 = vmatpush2.msra.mxu0 0.0
    %1825 = vmatprep.subr.mxu0 0.0
    %1826 = vmatpush2.msra.mxu0 0.0
    %1827 = vmatprep.subr.mxu0 0.0
    %1828 = vmatpush2.msra.mxu0 0.0
    %1829 = vmatprep.subr.mxu0 0.0
    %1830 = vmatpush2.msra.mxu0 0.0
    %1831 = vmatprep.mubr.f32.mxu0 0.0
    %1832 = vmatmul.mubr.f32.gmra.mxu0 %v1765
    %v1833 = vpop.f32.mrf.mxu0
    %v1834 = vadd.f32 %v1763, %v1833
    %v1835 = vpop.f32.mrf.mxu0
    %1836 = vdwg.mxu0
    %vm1837 = vcmask 8192
    %1838 = vst.msk [vmem:[#allocation5] sm:$0x1] %vm1837, %v1834
    // Predicated region
    $region78: #{tpu_custom_call.1} parent=1 // pred_check
      _
    $region79: #{tpu_custom_call.1} parent=1 // pred_check_branch
      %1840 = sbr.rel (0) target = $region81
    $region80: #{tpu_custom_call.1} parent=1 // pred_region
      %s1842 = ssub.s32 16, 16
      %1843 = vsyncadd [#allocation6], %s1842
      %s1845 = sshll.u32 [#allocation5], 4
      %s1846 = int_to_ptr.vmem [resolvable:$true] %s1845
      %1848 = dma.vmem_to_hbm [thread:$0]  %s1846, 16, %s19, [#allocation6]
    $region81: #{tpu_custom_call.1} parent=1 // pred_fallthru
      _
    // Predicated region
    $region82: #{tpu_custom_call.1} parent=1 // pred_check
      _
    $region83: #{tpu_custom_call.1} parent=1 // pred_check_branch
      %1850 = sbr.rel (0) target = $region85
    $region84: #{tpu_custom_call.1} parent=1 // pred_region
      %1851 = dma.done [#allocation6], 16
    $region85: #{tpu_custom_call.1} parent=1 // pred_fallthru
      _
    %1852 = vsyncpa [#allocation6], 1

</llo_original>
